<compile_context>
chip_gen: v5e
topology: v5e:2x2
jax: 0.10.0
libtpu: 0.0.40
codegen_flags: <defaults>
</compile_context>

<pallas_src>
import functools
import math

import jax
import jax.numpy as jnp
from jax.experimental import pallas as pl
from jax.experimental.pallas import tpu as pltpu

_LANE = 128          # vreg lane width
_SLAB_LANE = 1024    # wide, lane-dense slab rows (8 full vregs per row)
_GRID = 2            # even #grid steps >= 2 -> v7x megacore splits the work
_W_BASE = 14         # operand order: [x0, x1, y0..y3, z0..z7, w0..w15]


def _round_up(x, m):
    return -(-x // m) * m


# ---------------------------------------------------------------------------
# Static task plan: ordered (a_idx, b_idx, out_shape), one entry per returned
# tensor, where output = broadcast(op[a], out_shape) - broadcast(op[b], out_shape).
# The order exactly mirrors the PyTorch return tuple.
# ---------------------------------------------------------------------------
def _build_task_plan(op_shapes):
    Y, Z, W = 2, 6, _W_BASE
    plan = []

    def bshape(*shapes):
        return tuple(int(d) for d in jnp.broadcast_shapes(*shapes))

    def pair(a, b, t):
        out = bshape(op_shapes[a], op_shapes[t])
        plan.append((a, b, out))   # op[a] - op[b].expand_as(op[t])
        plan.append((b, a, out))   # op[b].expand(op[t].size()) - op[a]

    # ---- x ----
    pair(0, 1, 0)

    # ---- y ----  (i, j, expand-target index)
    for i, j, t in [(0, 1, 0), (0, 2, 0), (0, 3, 0), (1, 2, 0), (1, 3, 1), (2, 3, 2)]:
        pair(Y + i, Y + j, Y + t)

    # ---- z ----
    z_triples = [
        (0, 1, 0), (0, 2, 0), (0, 3, 0), (0, 4, 0), (0, 5, 0), (0, 6, 0), (0, 7, 0),
        (1, 2, 0), (1, 3, 0), (1, 4, 1), (1, 5, 1), (1, 6, 3), (1, 7, 1),
        (2, 3, 0), (2, 4, 2), (2, 5, 3), (2, 6, 2), (2, 7, 2),
        (3, 4, 1), (3, 5, 3), (3, 6, 3), (3, 7, 3),
        (4, 5, 1), (4, 6, 2), (4, 7, 4),
        (5, 6, 3), (5, 7, 5),
        (6, 7, 6),
    ]
    for i, j, t in z_triples:
        pair(Z + i, Z + j, Z + t)

    # ---- w ----  (expand target is always w[i])
    w_pairs = [
        (0, list(range(1, 16))),
        (1, [5, 6, 7, 11, 12, 13, 15]),
        (2, [5, 8, 9, 11, 12, 14, 15]),
        (3, [6, 8, 10, 11, 13, 14, 15]),
        (4, [7, 9, 10, 12, 13, 14, 15]),
        (5, [11, 12, 15]), (6, [11, 13, 15]), (7, [12, 13, 15]),
        (8, [11, 14, 15]), (9, [12, 14, 15]), (10, [13, 14, 15]),
        (11, [15]), (12, [15]), (13, [15]), (14, [15]),
    ]
    for i, js in w_pairs:
        for j in js:
            pair(W + i, W + j, W + i)

    # ---- trailing special cases ----
    plan.append((W + 11, W + 14, bshape(op_shapes[W + 5], op_shapes[W + 10])))   # w11.exp_as(w5) - w14.exp_as(w10)
    plan.append((W + 5, W + 11, bshape(op_shapes[W + 1], op_shapes[W + 11])))    # w5.expand(w1.size()) - w11
    plan.append((W + 15, W + 14, bshape((6, 7, 8, 9), op_shapes[W + 14])))       # w15.expand(6,7,8,9) - w14
    return plan


# ---------------------------------------------------------------------------
# Fused kernel:
#   * slab part  : lane-dense elementwise subtract of the (rows, 1024) slabs.
#   * w part     : broadcasts replayed by statically gathering rows out of the
#                  (16, 24, 128) operand table resident in VMEM; the 32 output
#                  rows are split across the 2 grid steps (one half per
#                  TensorCore on v7x).
# ---------------------------------------------------------------------------
def _fused_kernel(w_tbl_ref, a_ref, b_ref, w_out_ref, s_out_ref, *,
                  w_rows_pairs, per_step):
    s_out_ref[...] = a_ref[...] - b_ref[...]

    for step in range(len(w_rows_pairs) // per_step):
        pairs = w_rows_pairs[step * per_step:(step + 1) * per_step]

        @pl.when(pl.program_id(0) == step)
        def _write(pairs=pairs):
            for k, (ia, ib) in enumerate(pairs):
                w_out_ref[k] = w_tbl_ref[ia] - w_tbl_ref[ib]


# ---------------------------------------------------------------------------
# Model.forward -- single jit, single Pallas launch.
# ---------------------------------------------------------------------------
def model_forward(x0, x1, y, z, w):
    ops = [x0, x1, *y, *z, *w]
    dtype = jnp.result_type(*(o.dtype for o in ops))
    plan = _build_task_plan([tuple(o.shape) for o in ops])

    # Full w-family target (forced to (6,7,8,9) by w15.expand(6,7,8,9)).
    full = tuple(int(d) for d in
                 jnp.broadcast_shapes((6, 7, 8, 9), *(tuple(t.shape) for t in w)))
    full_n = math.prod(full)
    w_row = _round_up(full_n, _LANE) // _LANE        # 24 lane-tiles per row
    row_pad = w_row * _LANE                          # 3072

    # ---- route every task to the stacked-w path or the small-slab path ----
    w_gather, slab_tasks, routing = [], [], []
    for a, b, out_shape in plan:
        if out_shape == full and a >= _W_BASE and b >= _W_BASE:
            routing.append(("W", len(w_gather)))
            w_gather.append((a - _W_BASE, b - _W_BASE))
        else:
            routing.append(("S", len(slab_tasks)))
            slab_tasks.append((a, b, out_shape))

    n_pairs = len(w_gather)                           # 32 for this module
    assert n_pairs % _GRID == 0
    per_step = n_pairs // _GRID

    # ---- operand table: each w broadcast ONCE, lane-padded, (16, 24, 128) ----
    w_tbl = jnp.stack([jnp.broadcast_to(t, full).reshape(full_n) for t in w])
    w_tbl = jnp.pad(w_tbl.astype(dtype), ((0, 0), (0, row_pad - full_n)))
    w_tbl = w_tbl.reshape(len(w), w_row, _LANE)

    # ---- small-output slab: unique broadcasts built once (trace-level dedup) --
    cache = {}

    def bcast_flat(idx, shape):
        key = (idx, shape)
        if key not in cache:
            cache[key] = jnp.broadcast_to(ops[idx], shape).astype(dtype).reshape(-1)
        return cache[key]

    a_parts, b_parts, metas = [], [], []
    off = 0
    for a, b, s in slab_tasks:
        n = math.prod(s)
        a_parts.append(bcast_flat(a, s))
        b_parts.append(bcast_flat(b, s))
        metas.append((off, n, s))
        off += n

    # Pad so rows split evenly into _GRID blocks whose row count is a
    # multiple of 8 sublanes.
    padded = _round_up(max(off, 1), _SLAB_LANE * _GRID * 8)
    rows = padded // _SLAB_LANE
    a_flat = jnp.concatenate(a_parts)
    b_flat = jnp.concatenate(b_parts)
    if padded > off:
        a_flat = jnp.pad(a_flat, (0, padded - off))
        b_flat = jnp.pad(b_flat, (0, padded - off))
    a2d = a_flat.reshape(rows, _SLAB_LANE)
    b2d = b_flat.reshape(rows, _SLAB_LANE)
    blk_rows = rows // _GRID

    kernel = functools.partial(_fused_kernel, w_rows_pairs=tuple(w_gather),
                               per_step=per_step)

    total_out = n_pairs * row_pad + padded
    w_out, s_out = pl.pallas_call(
        kernel,
        grid=(_GRID,),
        in_specs=[
            # Operand table stays resident (same block every step).
            pl.BlockSpec((len(w), w_row, _LANE), lambda i: (0, 0, 0)),
            pl.BlockSpec((blk_rows, _SLAB_LANE), lambda i: (i, 0)),
            pl.BlockSpec((blk_rows, _SLAB_LANE), lambda i: (i, 0)),
        ],
        out_specs=[
            pl.BlockSpec((per_step, w_row, _LANE), lambda i: (i, 0, 0)),
            pl.BlockSpec((blk_rows, _SLAB_LANE), lambda i: (i, 0)),
        ],
        out_shape=[
            jax.ShapeDtypeStruct((n_pairs, w_row, _LANE), dtype),
            jax.ShapeDtypeStruct((rows, _SLAB_LANE), dtype),
        ],
        compiler_params=pltpu.CompilerParams(
            # Harmless on single-core v5e/v6e; lets v7x put one step per core.
            dimension_semantics=("parallel",)),
        cost_estimate=pl.CostEstimate(
            flops=total_out,
            transcendentals=0,
            bytes_accessed=4 * (len(w) * w_row * _LANE + 2 * padded + total_out)),
    )(w_tbl, a2d, b2d)

    # ---- fan the two grouped kernel outputs back into the 203 results ----
    s_flat = s_out.reshape(padded)
    outs = []
    for kind, idx in routing:
        if kind == "W":
            outs.append(w_out[idx].reshape(row_pad)[:full_n].reshape(full))
        else:
            o, n, s = metas[idx]
            outs.append(s_flat[o:o + n].reshape(s))
    return tuple(outs)


def model_forward_ref(x0, x1, y, z, w):
    """Plain-JAX reference with identical semantics (for verification)."""
    ops = [x0, x1, *y, *z, *w]
    plan = _build_task_plan([tuple(o.shape) for o in ops])
    return tuple(jnp.broadcast_to(ops[a], s) - jnp.broadcast_to(ops[b], s)
                 for a, b, s in plan)


# ---------------------------------------------------------------------------
# Main
# ---------------------------------------------------------------------------
if __name__ == "__main__":
    key = jax.random.PRNGKey(0)
    keys = iter(jax.random.split(key, 40))

    def rnd(shape):
        return jax.random.uniform(next(keys), shape, dtype=jnp.float32)

    # Shapes consistent with the forward (the w-family full shape (6,7,8,9)
    # is forced by the hard-coded w15.expand(6, 7, 8, 9)).
    x0 = rnd((16,))
    x1 = rnd((1,))

    y = [rnd(s) for s in [(3, 16), (3, 1), (1, 16), (1, 1)]]

    z = [rnd(s) for s in [(4, 3, 16), (4, 3, 1), (4, 1, 16), (1, 3, 16),
                          (4, 1, 1), (1, 3, 1), (1, 1, 16), (1, 1, 1)]]

    w_full = (6, 7, 8, 9)
    w_singleton_sets = [set(), {0}, {1}, {2}, {3},
                        {0, 1}, {0, 2}, {0, 3}, {1, 2}, {1, 3}, {2, 3},
                        {0, 1, 2}, {0, 1, 3}, {0, 2, 3}, {1, 2, 3}, {0, 1, 2, 3}]
    w = [rnd(tuple(1 if d in s else w_full[d] for d in range(4)))
         for s in w_singleton_sets]

    # Pallas implementation: one jit, one pallas_call.
    fwd = jax.jit(model_forward)
    outs = jax.block_until_ready(fwd(x0, x1, y, z, w))

    # Verify against the plain-JAX reference.
    refs = model_forward_ref(x0, x1, y, z, w)
    assert len(outs) == len(refs) == 203
    for o, r in zip(outs, refs):
        assert o.shape == r.shape, (o.shape, r.shape)
        assert jnp.allclose(o, r, atol=1e-6), "Pallas result mismatch"

    print("KERNEL_OK")
</pallas_src>

<mosaic_0001>
module attributes {stable_mosaic.version = 11 : i64} {
  func.func @_fused_kernel(%arg0: i32, %arg1: memref<16x24x128xf32, #tpu.memory_space<vmem>>, %arg2: memref<16x1024xf32, #tpu.memory_space<vmem>>, %arg3: memref<16x1024xf32, #tpu.memory_space<vmem>>, %arg4: memref<16x24x128xf32, #tpu.memory_space<vmem>>, %arg5: memref<16x1024xf32, #tpu.memory_space<vmem>>) attributes {dimension_semantics = [#tpu.dimension_semantics<parallel>], iteration_bounds = array<i64: 2>, scalar_prefetch = 0 : i64, scratch_operands = 0 : i64, tpu.core_type = #tpu.core_type<tc>, window_params = [{pipeline_mode = #tpu.pipeline_mode<synchronous>, transform_indices = @transform_0, window_bounds = array<i64: 16, 24, 128>}, {transform_indices = @transform_1, window_bounds = array<i64: 16, 1024>}, {transform_indices = @transform_2, window_bounds = array<i64: 16, 1024>}, {transform_indices = @transform_3, window_bounds = array<i64: 16, 24, 128>}, {transform_indices = @transform_4, window_bounds = array<i64: 16, 1024>}]} {
    %c0 = arith.constant 0 : index
    %c0_0 = arith.constant 0 : index
    %0 = vector.load %arg2[%c0, %c0_0] : memref<16x1024xf32, #tpu.memory_space<vmem>>, vector<16x1024xf32>
    %c0_1 = arith.constant 0 : index
    %c0_2 = arith.constant 0 : index
    %1 = vector.load %arg3[%c0_1, %c0_2] : memref<16x1024xf32, #tpu.memory_space<vmem>>, vector<16x1024xf32>
    %2 = arith.subf %0, %1 : vector<16x1024xf32>
    %c0_3 = arith.constant 0 : index
    %c0_4 = arith.constant 0 : index
    %3 = vector.load %arg5[%c0_3, %c0_4] : memref<16x1024xf32, #tpu.memory_space<vmem>>, vector<16x1024xf32>
    tpu.vector_store %arg5[%c0_3, %c0_4], %2 {strides = array<i32>} : memref<16x1024xf32, #tpu.memory_space<vmem>>, vector<16x1024xf32>,
    %c0_i32 = arith.constant 0 : i32
    %4 = arith.cmpi eq, %arg0, %c0_i32 : i32
    %5 = arith.extui %4 : i1 to i32
    %c0_i32_5 = arith.constant 0 : i32
    %6 = arith.cmpi ne, %5, %c0_i32_5 : i32
    scf.if %6 {
      %c0_7 = arith.constant 0 : index
      %c0_8 = arith.constant 0 : index
      %c0_9 = arith.constant 0 : index
      %10 = vector.load %arg1[%c0_7, %c0_8, %c0_9] : memref<16x24x128xf32, #tpu.memory_space<vmem>>, vector<1x24x128xf32>
      %11 = vector.shape_cast %10 : vector<1x24x128xf32> to vector<24x128xf32>
      %c1 = arith.constant 1 : index
      %c0_10 = arith.constant 0 : index
      %c0_11 = arith.constant 0 : index
      %12 = vector.load %arg1[%c1, %c0_10, %c0_11] : memref<16x24x128xf32, #tpu.memory_space<vmem>>, vector<1x24x128xf32>
      %13 = vector.shape_cast %12 : vector<1x24x128xf32> to vector<24x128xf32>
      %14 = arith.subf %11, %13 : vector<24x128xf32>
      %c0_12 = arith.constant 0 : index
      %c0_13 = arith.constant 0 : index
      %c0_14 = arith.constant 0 : index
      %15 = vector.load %arg4[%c0_12, %c0_13, %c0_14] : memref<16x24x128xf32, #tpu.memory_space<vmem>>, vector<1x24x128xf32>
      %16 = vector.shape_cast %15 : vector<1x24x128xf32> to vector<24x128xf32>
      %17 = vector.shape_cast %14 : vector<24x128xf32> to vector<1x24x128xf32>
      tpu.vector_store %arg4[%c0_12, %c0_13, %c0_14], %17 {strides = array<i32>} : memref<16x24x128xf32, #tpu.memory_space<vmem>>, vector<1x24x128xf32>,
      %c1_15 = arith.constant 1 : index
      %c0_16 = arith.constant 0 : index
      %c0_17 = arith.constant 0 : index
      %18 = vector.load %arg1[%c1_15, %c0_16, %c0_17] : memref<16x24x128xf32, #tpu.memory_space<vmem>>, vector<1x24x128xf32>
      %19 = vector.shape_cast %18 : vector<1x24x128xf32> to vector<24x128xf32>
      %c0_18 = arith.constant 0 : index
      %c0_19 = arith.constant 0 : index
      %c0_20 = arith.constant 0 : index
      %20 = vector.load %arg1[%c0_18, %c0_19, %c0_20] : memref<16x24x128xf32, #tpu.memory_space<vmem>>, vector<1x24x128xf32>
      %21 = vector.shape_cast %20 : vector<1x24x128xf32> to vector<24x128xf32>
      %22 = arith.subf %19, %21 : vector<24x128xf32>
      %c1_21 = arith.constant 1 : index
      %c0_22 = arith.constant 0 : index
      %c0_23 = arith.constant 0 : index
      %23 = vector.load %arg4[%c1_21, %c0_22, %c0_23] : memref<16x24x128xf32, #tpu.memory_space<vmem>>, vector<1x24x128xf32>
      %24 = vector.shape_cast %23 : vector<1x24x128xf32> to vector<24x128xf32>
      %25 = vector.shape_cast %22 : vector<24x128xf32> to vector<1x24x128xf32>
      tpu.vector_store %arg4[%c1_21, %c0_22, %c0_23], %25 {strides = array<i32>} : memref<16x24x128xf32, #tpu.memory_space<vmem>>, vector<1x24x128xf32>,
      %c0_24 = arith.constant 0 : index
      %c0_25 = arith.constant 0 : index
      %c0_26 = arith.constant 0 : index
      %26 = vector.load %arg1[%c0_24, %c0_25, %c0_26] : memref<16x24x128xf32, #tpu.memory_space<vmem>>, vector<1x24x128xf32>
      %27 = vector.shape_cast %26 : vector<1x24x128xf32> to vector<24x128xf32>
      %c2 = arith.constant 2 : index
      %c0_27 = arith.constant 0 : index
      %c0_28 = arith.constant 0 : index
      %28 = vector.load %arg1[%c2, %c0_27, %c0_28] : memref<16x24x128xf32, #tpu.memory_space<vmem>>, vector<1x24x128xf32>
      %29 = vector.shape_cast %28 : vector<1x24x128xf32> to vector<24x128xf32>
      %30 = arith.subf %27, %29 : vector<24x128xf32>
      %c2_29 = arith.constant 2 : index
      %c0_30 = arith.constant 0 : index
      %c0_31 = arith.constant 0 : index
      %31 = vector.load %arg4[%c2_29, %c0_30, %c0_31] : memref<16x24x128xf32, #tpu.memory_space<vmem>>, vector<1x24x128xf32>
      %32 = vector.shape_cast %31 : vector<1x24x128xf32> to vector<24x128xf32>
      %33 = vector.shape_cast %30 : vector<24x128xf32> to vector<1x24x128xf32>
      tpu.vector_store %arg4[%c2_29, %c0_30, %c0_31], %33 {strides = array<i32>} : memref<16x24x128xf32, #tpu.memory_space<vmem>>, vector<1x24x128xf32>,
      %c2_32 = arith.constant 2 : index
      %c0_33 = arith.constant 0 : index
      %c0_34 = arith.constant 0 : index
      %34 = vector.load %arg1[%c2_32, %c0_33, %c0_34] : memref<16x24x128xf32, #tpu.memory_space<vmem>>, vector<1x24x128xf32>
      %35 = vector.shape_cast %34 : vector<1x24x128xf32> to vector<24x128xf32>
      %c0_35 = arith.constant 0 : index
      %c0_36 = arith.constant 0 : index
      %c0_37 = arith.constant 0 : index
      %36 = vector.load %arg1[%c0_35, %c0_36, %c0_37] : memref<16x24x128xf32, #tpu.memory_space<vmem>>, vector<1x24x128xf32>
      %37 = vector.shape_cast %36 : vector<1x24x128xf32> to vector<24x128xf32>
      %38 = arith.subf %35, %37 : vector<24x128xf32>
      %c3 = arith.constant 3 : index
      %c0_38 = arith.constant 0 : index
      %c0_39 = arith.constant 0 : index
      %39 = vector.load %arg4[%c3, %c0_38, %c0_39] : memref<16x24x128xf32, #tpu.memory_space<vmem>>, vector<1x24x128xf32>
      %40 = vector.shape_cast %39 : vector<1x24x128xf32> to vector<24x128xf32>
      %41 = vector.shape_cast %38 : vector<24x128xf32> to vector<1x24x128xf32>
      tpu.vector_store %arg4[%c3, %c0_38, %c0_39], %41 {strides = array<i32>} : memref<16x24x128xf32, #tpu.memory_space<vmem>>, vector<1x24x128xf32>,
      %c0_40 = arith.constant 0 : index
      %c0_41 = arith.constant 0 : index
      %c0_42 = arith.constant 0 : index
      %42 = vector.load %arg1[%c0_40, %c0_41, %c0_42] : memref<16x24x128xf32, #tpu.memory_space<vmem>>, vector<1x24x128xf32>
      %43 = vector.shape_cast %42 : vector<1x24x128xf32> to vector<24x128xf32>
      %c3_43 = arith.constant 3 : index
      %c0_44 = arith.constant 0 : index
      %c0_45 = arith.constant 0 : index
      %44 = vector.load %arg1[%c3_43, %c0_44, %c0_45] : memref<16x24x128xf32, #tpu.memory_space<vmem>>, vector<1x24x128xf32>
      %45 = vector.shape_cast %44 : vector<1x24x128xf32> to vector<24x128xf32>
      %46 = arith.subf %43, %45 : vector<24x128xf32>
      %c4 = arith.constant 4 : index
      %c0_46 = arith.constant 0 : index
      %c0_47 = arith.constant 0 : index
      %47 = vector.load %arg4[%c4, %c0_46, %c0_47] : memref<16x24x128xf32, #tpu.memory_space<vmem>>, vector<1x24x128xf32>
      %48 = vector.shape_cast %47 : vector<1x24x128xf32> to vector<24x128xf32>
      %49 = vector.shape_cast %46 : vector<24x128xf32> to vector<1x24x128xf32>
      tpu.vector_store %arg4[%c4, %c0_46, %c0_47], %49 {strides = array<i32>} : memref<16x24x128xf32, #tpu.memory_space<vmem>>, vector<1x24x128xf32>,
      %c3_48 = arith.constant 3 : index
      %c0_49 = arith.constant 0 : index
      %c0_50 = arith.constant 0 : index
      %50 = vector.load %arg1[%c3_48, %c0_49, %c0_50] : memref<16x24x128xf32, #tpu.memory_space<vmem>>, vector<1x24x128xf32>
      %51 = vector.shape_cast %50 : vector<1x24x128xf32> to vector<24x128xf32>
      %c0_51 = arith.constant 0 : index
      %c0_52 = arith.constant 0 : index
      %c0_53 = arith.constant 0 : index
      %52 = vector.load %arg1[%c0_51, %c0_52, %c0_53] : memref<16x24x128xf32, #tpu.memory_space<vmem>>, vector<1x24x128xf32>
      %53 = vector.shape_cast %52 : vector<1x24x128xf32> to vector<24x128xf32>
      %54 = arith.subf %51, %53 : vector<24x128xf32>
      %c5 = arith.constant 5 : index
      %c0_54 = arith.constant 0 : index
      %c0_55 = arith.constant 0 : index
      %55 = vector.load %arg4[%c5, %c0_54, %c0_55] : memref<16x24x128xf32, #tpu.memory_space<vmem>>, vector<1x24x128xf32>
      %56 = vector.shape_cast %55 : vector<1x24x128xf32> to vector<24x128xf32>
      %57 = vector.shape_cast %54 : vector<24x128xf32> to vector<1x24x128xf32>
      tpu.vector_store %arg4[%c5, %c0_54, %c0_55], %57 {strides = array<i32>} : memref<16x24x128xf32, #tpu.memory_space<vmem>>, vector<1x24x128xf32>,
      %c0_56 = arith.constant 0 : index
      %c0_57 = arith.constant 0 : index
      %c0_58 = arith.constant 0 : index
      %58 = vector.load %arg1[%c0_56, %c0_57, %c0_58] : memref<16x24x128xf32, #tpu.memory_space<vmem>>, vector<1x24x128xf32>
      %59 = vector.shape_cast %58 : vector<1x24x128xf32> to vector<24x128xf32>
      %c4_59 = arith.constant 4 : index
      %c0_60 = arith.constant 0 : index
      %c0_61 = arith.constant 0 : index
      %60 = vector.load %arg1[%c4_59, %c0_60, %c0_61] : memref<16x24x128xf32, #tpu.memory_space<vmem>>, vector<1x24x128xf32>
      %61 = vector.shape_cast %60 : vector<1x24x128xf32> to vector<24x128xf32>
      %62 = arith.subf %59, %61 : vector<24x128xf32>
      %c6 = arith.constant 6 : index
      %c0_62 = arith.constant 0 : index
      %c0_63 = arith.constant 0 : index
      %63 = vector.load %arg4[%c6, %c0_62, %c0_63] : memref<16x24x128xf32, #tpu.memory_space<vmem>>, vector<1x24x128xf32>
      %64 = vector.shape_cast %63 : vector<1x24x128xf32> to vector<24x128xf32>
      %65 = vector.shape_cast %62 : vector<24x128xf32> to vector<1x24x128xf32>
      tpu.vector_store %arg4[%c6, %c0_62, %c0_63], %65 {strides = array<i32>} : memref<16x24x128xf32, #tpu.memory_space<vmem>>, vector<1x24x128xf32>,
      %c4_64 = arith.constant 4 : index
      %c0_65 = arith.constant 0 : index
      %c0_66 = arith.constant 0 : index
      %66 = vector.load %arg1[%c4_64, %c0_65, %c0_66] : memref<16x24x128xf32, #tpu.memory_space<vmem>>, vector<1x24x128xf32>
      %67 = vector.shape_cast %66 : vector<1x24x128xf32> to vector<24x128xf32>
      %c0_67 = arith.constant 0 : index
      %c0_68 = arith.constant 0 : index
      %c0_69 = arith.constant 0 : index
      %68 = vector.load %arg1[%c0_67, %c0_68, %c0_69] : memref<16x24x128xf32, #tpu.memory_space<vmem>>, vector<1x24x128xf32>
      %69 = vector.shape_cast %68 : vector<1x24x128xf32> to vector<24x128xf32>
      %70 = arith.subf %67, %69 : vector<24x128xf32>
      %c7 = arith.constant 7 : index
      %c0_70 = arith.constant 0 : index
      %c0_71 = arith.constant 0 : index
      %71 = vector.load %arg4[%c7, %c0_70, %c0_71] : memref<16x24x128xf32, #tpu.memory_space<vmem>>, vector<1x24x128xf32>
      %72 = vector.shape_cast %71 : vector<1x24x128xf32> to vector<24x128xf32>
      %73 = vector.shape_cast %70 : vector<24x128xf32> to vector<1x24x128xf32>
      tpu.vector_store %arg4[%c7, %c0_70, %c0_71], %73 {strides = array<i32>} : memref<16x24x128xf32, #tpu.memory_space<vmem>>, vector<1x24x128xf32>,
      %c0_72 = arith.constant 0 : index
      %c0_73 = arith.constant 0 : index
      %c0_74 = arith.constant 0 : index
      %74 = vector.load %arg1[%c0_72, %c0_73, %c0_74] : memref<16x24x128xf32, #tpu.memory_space<vmem>>, vector<1x24x128xf32>
      %75 = vector.shape_cast %74 : vector<1x24x128xf32> to vector<24x128xf32>
      %c5_75 = arith.constant 5 : index
      %c0_76 = arith.constant 0 : index
      %c0_77 = arith.constant 0 : index
      %76 = vector.load %arg1[%c5_75, %c0_76, %c0_77] : memref<16x24x128xf32, #tpu.memory_space<vmem>>, vector<1x24x128xf32>
      %77 = vector.shape_cast %76 : vector<1x24x128xf32> to vector<24x128xf32>
      %78 = arith.subf %75, %77 : vector<24x128xf32>
      %c8 = arith.constant 8 : index
      %c0_78 = arith.constant 0 : index
      %c0_79 = arith.constant 0 : index
      %79 = vector.load %arg4[%c8, %c0_78, %c0_79] : memref<16x24x128xf32, #tpu.memory_space<vmem>>, vector<1x24x128xf32>
      %80 = vector.shape_cast %79 : vector<1x24x128xf32> to vector<24x128xf32>
      %81 = vector.shape_cast %78 : vector<24x128xf32> to vector<1x24x128xf32>
      tpu.vector_store %arg4[%c8, %c0_78, %c0_79], %81 {strides = array<i32>} : memref<16x24x128xf32, #tpu.memory_space<vmem>>, vector<1x24x128xf32>,
      %c5_80 = arith.constant 5 : index
      %c0_81 = arith.constant 0 : index
      %c0_82 = arith.constant 0 : index
      %82 = vector.load %arg1[%c5_80, %c0_81, %c0_82] : memref<16x24x128xf32, #tpu.memory_space<vmem>>, vector<1x24x128xf32>
      %83 = vector.shape_cast %82 : vector<1x24x128xf32> to vector<24x128xf32>
      %c0_83 = arith.constant 0 : index
      %c0_84 = arith.constant 0 : index
      %c0_85 = arith.constant 0 : index
      %84 = vector.load %arg1[%c0_83, %c0_84, %c0_85] : memref<16x24x128xf32, #tpu.memory_space<vmem>>, vector<1x24x128xf32>
      %85 = vector.shape_cast %84 : vector<1x24x128xf32> to vector<24x128xf32>
      %86 = arith.subf %83, %85 : vector<24x128xf32>
      %c9 = arith.constant 9 : index
      %c0_86 = arith.constant 0 : index
      %c0_87 = arith.constant 0 : index
      %87 = vector.load %arg4[%c9, %c0_86, %c0_87] : memref<16x24x128xf32, #tpu.memory_space<vmem>>, vector<1x24x128xf32>
      %88 = vector.shape_cast %87 : vector<1x24x128xf32> to vector<24x128xf32>
      %89 = vector.shape_cast %86 : vector<24x128xf32> to vector<1x24x128xf32>
      tpu.vector_store %arg4[%c9, %c0_86, %c0_87], %89 {strides = array<i32>} : memref<16x24x128xf32, #tpu.memory_space<vmem>>, vector<1x24x128xf32>,
      %c0_88 = arith.constant 0 : index
      %c0_89 = arith.constant 0 : index
      %c0_90 = arith.constant 0 : index
      %90 = vector.load %arg1[%c0_88, %c0_89, %c0_90] : memref<16x24x128xf32, #tpu.memory_space<vmem>>, vector<1x24x128xf32>
      %91 = vector.shape_cast %90 : vector<1x24x128xf32> to vector<24x128xf32>
      %c6_91 = arith.constant 6 : index
      %c0_92 = arith.constant 0 : index
      %c0_93 = arith.constant 0 : index
      %92 = vector.load %arg1[%c6_91, %c0_92, %c0_93] : memref<16x24x128xf32, #tpu.memory_space<vmem>>, vector<1x24x128xf32>
      %93 = vector.shape_cast %92 : vector<1x24x128xf32> to vector<24x128xf32>
      %94 = arith.subf %91, %93 : vector<24x128xf32>
      %c10 = arith.constant 10 : index
      %c0_94 = arith.constant 0 : index
      %c0_95 = arith.constant 0 : index
      %95 = vector.load %arg4[%c10, %c0_94, %c0_95] : memref<16x24x128xf32, #tpu.memory_space<vmem>>, vector<1x24x128xf32>
      %96 = vector.shape_cast %95 : vector<1x24x128xf32> to vector<24x128xf32>
      %97 = vector.shape_cast %94 : vector<24x128xf32> to vector<1x24x128xf32>
      tpu.vector_store %arg4[%c10, %c0_94, %c0_95], %97 {strides = array<i32>} : memref<16x24x128xf32, #tpu.memory_space<vmem>>, vector<1x24x128xf32>,
      %c6_96 = arith.constant 6 : index
      %c0_97 = arith.constant 0 : index
      %c0_98 = arith.constant 0 : index
      %98 = vector.load %arg1[%c6_96, %c0_97, %c0_98] : memref<16x24x128xf32, #tpu.memory_space<vmem>>, vector<1x24x128xf32>
      %99 = vector.shape_cast %98 : vector<1x24x128xf32> to vector<24x128xf32>
      %c0_99 = arith.constant 0 : index
      %c0_100 = arith.constant 0 : index
      %c0_101 = arith.constant 0 : index
      %100 = vector.load %arg1[%c0_99, %c0_100, %c0_101] : memref<16x24x128xf32, #tpu.memory_space<vmem>>, vector<1x24x128xf32>
      %101 = vector.shape_cast %100 : vector<1x24x128xf32> to vector<24x128xf32>
      %102 = arith.subf %99, %101 : vector<24x128xf32>
      %c11 = arith.constant 11 : index
      %c0_102 = arith.constant 0 : index
      %c0_103 = arith.constant 0 : index
      %103 = vector.load %arg4[%c11, %c0_102, %c0_103] : memref<16x24x128xf32, #tpu.memory_space<vmem>>, vector<1x24x128xf32>
      %104 = vector.shape_cast %103 : vector<1x24x128xf32> to vector<24x128xf32>
      %105 = vector.shape_cast %102 : vector<24x128xf32> to vector<1x24x128xf32>
      tpu.vector_store %arg4[%c11, %c0_102, %c0_103], %105 {strides = array<i32>} : memref<16x24x128xf32, #tpu.memory_space<vmem>>, vector<1x24x128xf32>,
      %c0_104 = arith.constant 0 : index
      %c0_105 = arith.constant 0 : index
      %c0_106 = arith.constant 0 : index
      %106 = vector.load %arg1[%c0_104, %c0_105, %c0_106] : memref<16x24x128xf32, #tpu.memory_space<vmem>>, vector<1x24x128xf32>
      %107 = vector.shape_cast %106 : vector<1x24x128xf32> to vector<24x128xf32>
      %c7_107 = arith.constant 7 : index
      %c0_108 = arith.constant 0 : index
      %c0_109 = arith.constant 0 : index
      %108 = vector.load %arg1[%c7_107, %c0_108, %c0_109] : memref<16x24x128xf32, #tpu.memory_space<vmem>>, vector<1x24x128xf32>
      %109 = vector.shape_cast %108 : vector<1x24x128xf32> to vector<24x128xf32>
      %110 = arith.subf %107, %109 : vector<24x128xf32>
      %c12 = arith.constant 12 : index
      %c0_110 = arith.constant 0 : index
      %c0_111 = arith.constant 0 : index
      %111 = vector.load %arg4[%c12, %c0_110, %c0_111] : memref<16x24x128xf32, #tpu.memory_space<vmem>>, vector<1x24x128xf32>
      %112 = vector.shape_cast %111 : vector<1x24x128xf32> to vector<24x128xf32>
      %113 = vector.shape_cast %110 : vector<24x128xf32> to vector<1x24x128xf32>
      tpu.vector_store %arg4[%c12, %c0_110, %c0_111], %113 {strides = array<i32>} : memref<16x24x128xf32, #tpu.memory_space<vmem>>, vector<1x24x128xf32>,
      %c7_112 = arith.constant 7 : index
      %c0_113 = arith.constant 0 : index
      %c0_114 = arith.constant 0 : index
      %114 = vector.load %arg1[%c7_112, %c0_113, %c0_114] : memref<16x24x128xf32, #tpu.memory_space<vmem>>, vector<1x24x128xf32>
      %115 = vector.shape_cast %114 : vector<1x24x128xf32> to vector<24x128xf32>
      %c0_115 = arith.constant 0 : index
      %c0_116 = arith.constant 0 : index
      %c0_117 = arith.constant 0 : index
      %116 = vector.load %arg1[%c0_115, %c0_116, %c0_117] : memref<16x24x128xf32, #tpu.memory_space<vmem>>, vector<1x24x128xf32>
      %117 = vector.shape_cast %116 : vector<1x24x128xf32> to vector<24x128xf32>
      %118 = arith.subf %115, %117 : vector<24x128xf32>
      %c13 = arith.constant 13 : index
      %c0_118 = arith.constant 0 : index
      %c0_119 = arith.constant 0 : index
      %119 = vector.load %arg4[%c13, %c0_118, %c0_119] : memref<16x24x128xf32, #tpu.memory_space<vmem>>, vector<1x24x128xf32>
      %120 = vector.shape_cast %119 : vector<1x24x128xf32> to vector<24x128xf32>
      %121 = vector.shape_cast %118 : vector<24x128xf32> to vector<1x24x128xf32>
      tpu.vector_store %arg4[%c13, %c0_118, %c0_119], %121 {strides = array<i32>} : memref<16x24x128xf32, #tpu.memory_space<vmem>>, vector<1x24x128xf32>,
      %c0_120 = arith.constant 0 : index
      %c0_121 = arith.constant 0 : index
      %c0_122 = arith.constant 0 : index
      %122 = vector.load %arg1[%c0_120, %c0_121, %c0_122] : memref<16x24x128xf32, #tpu.memory_space<vmem>>, vector<1x24x128xf32>
      %123 = vector.shape_cast %122 : vector<1x24x128xf32> to vector<24x128xf32>
      %c8_123 = arith.constant 8 : index
      %c0_124 = arith.constant 0 : index
      %c0_125 = arith.constant 0 : index
      %124 = vector.load %arg1[%c8_123, %c0_124, %c0_125] : memref<16x24x128xf32, #tpu.memory_space<vmem>>, vector<1x24x128xf32>
      %125 = vector.shape_cast %124 : vector<1x24x128xf32> to vector<24x128xf32>
      %126 = arith.subf %123, %125 : vector<24x128xf32>
      %c14 = arith.constant 14 : index
      %c0_126 = arith.constant 0 : index
      %c0_127 = arith.constant 0 : index
      %127 = vector.load %arg4[%c14, %c0_126, %c0_127] : memref<16x24x128xf32, #tpu.memory_space<vmem>>, vector<1x24x128xf32>
      %128 = vector.shape_cast %127 : vector<1x24x128xf32> to vector<24x128xf32>
      %129 = vector.shape_cast %126 : vector<24x128xf32> to vector<1x24x128xf32>
      tpu.vector_store %arg4[%c14, %c0_126, %c0_127], %129 {strides = array<i32>} : memref<16x24x128xf32, #tpu.memory_space<vmem>>, vector<1x24x128xf32>,
      %c8_128 = arith.constant 8 : index
      %c0_129 = arith.constant 0 : index
      %c0_130 = arith.constant 0 : index
      %130 = vector.load %arg1[%c8_128, %c0_129, %c0_130] : memref<16x24x128xf32, #tpu.memory_space<vmem>>, vector<1x24x128xf32>
      %131 = vector.shape_cast %130 : vector<1x24x128xf32> to vector<24x128xf32>
      %c0_131 = arith.constant 0 : index
      %c0_132 = arith.constant 0 : index
      %c0_133 = arith.constant 0 : index
      %132 = vector.load %arg1[%c0_131, %c0_132, %c0_133] : memref<16x24x128xf32, #tpu.memory_space<vmem>>, vector<1x24x128xf32>
      %133 = vector.shape_cast %132 : vector<1x24x128xf32> to vector<24x128xf32>
      %134 = arith.subf %131, %133 : vector<24x128xf32>
      %c15 = arith.constant 15 : index
      %c0_134 = arith.constant 0 : index
      %c0_135 = arith.constant 0 : index
      %135 = vector.load %arg4[%c15, %c0_134, %c0_135] : memref<16x24x128xf32, #tpu.memory_space<vmem>>, vector<1x24x128xf32>
      %136 = vector.shape_cast %135 : vector<1x24x128xf32> to vector<24x128xf32>
      %137 = vector.shape_cast %134 : vector<24x128xf32> to vector<1x24x128xf32>
      tpu.vector_store %arg4[%c15, %c0_134, %c0_135], %137 {strides = array<i32>} : memref<16x24x128xf32, #tpu.memory_space<vmem>>, vector<1x24x128xf32>,
    } else {
    }
    %c1_i32 = arith.constant 1 : i32
    %7 = arith.cmpi eq, %arg0, %c1_i32 : i32
    %8 = arith.extui %7 : i1 to i32
    %c0_i32_6 = arith.constant 0 : i32
    %9 = arith.cmpi ne, %8, %c0_i32_6 : i32
    scf.if %9 {
      %c0_7 = arith.constant 0 : index
      %c0_8 = arith.constant 0 : index
      %c0_9 = arith.constant 0 : index
      %10 = vector.load %arg1[%c0_7, %c0_8, %c0_9] : memref<16x24x128xf32, #tpu.memory_space<vmem>>, vector<1x24x128xf32>
      %11 = vector.shape_cast %10 : vector<1x24x128xf32> to vector<24x128xf32>
      %c9 = arith.constant 9 : index
      %c0_10 = arith.constant 0 : index
      %c0_11 = arith.constant 0 : index
      %12 = vector.load %arg1[%c9, %c0_10, %c0_11] : memref<16x24x128xf32, #tpu.memory_space<vmem>>, vector<1x24x128xf32>
      %13 = vector.shape_cast %12 : vector<1x24x128xf32> to vector<24x128xf32>
      %14 = arith.subf %11, %13 : vector<24x128xf32>
      %c0_12 = arith.constant 0 : index
      %c0_13 = arith.constant 0 : index
      %c0_14 = arith.constant 0 : index
      %15 = vector.load %arg4[%c0_12, %c0_13, %c0_14] : memref<16x24x128xf32, #tpu.memory_space<vmem>>, vector<1x24x128xf32>
      %16 = vector.shape_cast %15 : vector<1x24x128xf32> to vector<24x128xf32>
      %17 = vector.shape_cast %14 : vector<24x128xf32> to vector<1x24x128xf32>
      tpu.vector_store %arg4[%c0_12, %c0_13, %c0_14], %17 {strides = array<i32>} : memref<16x24x128xf32, #tpu.memory_space<vmem>>, vector<1x24x128xf32>,
      %c9_15 = arith.constant 9 : index
      %c0_16 = arith.constant 0 : index
      %c0_17 = arith.constant 0 : index
      %18 = vector.load %arg1[%c9_15, %c0_16, %c0_17] : memref<16x24x128xf32, #tpu.memory_space<vmem>>, vector<1x24x128xf32>
      %19 = vector.shape_cast %18 : vector<1x24x128xf32> to vector<24x128xf32>
      %c0_18 = arith.constant 0 : index
      %c0_19 = arith.constant 0 : index
      %c0_20 = arith.constant 0 : index
      %20 = vector.load %arg1[%c0_18, %c0_19, %c0_20] : memref<16x24x128xf32, #tpu.memory_space<vmem>>, vector<1x24x128xf32>
      %21 = vector.shape_cast %20 : vector<1x24x128xf32> to vector<24x128xf32>
      %22 = arith.subf %19, %21 : vector<24x128xf32>
      %c1 = arith.constant 1 : index
      %c0_21 = arith.constant 0 : index
      %c0_22 = arith.constant 0 : index
      %23 = vector.load %arg4[%c1, %c0_21, %c0_22] : memref<16x24x128xf32, #tpu.memory_space<vmem>>, vector<1x24x128xf32>
      %24 = vector.shape_cast %23 : vector<1x24x128xf32> to vector<24x128xf32>
      %25 = vector.shape_cast %22 : vector<24x128xf32> to vector<1x24x128xf32>
      tpu.vector_store %arg4[%c1, %c0_21, %c0_22], %25 {strides = array<i32>} : memref<16x24x128xf32, #tpu.memory_space<vmem>>, vector<1x24x128xf32>,
      %c0_23 = arith.constant 0 : index
      %c0_24 = arith.constant 0 : index
      %c0_25 = arith.constant 0 : index
      %26 = vector.load %arg1[%c0_23, %c0_24, %c0_25] : memref<16x24x128xf32, #tpu.memory_space<vmem>>, vector<1x24x128xf32>
      %27 = vector.shape_cast %26 : vector<1x24x128xf32> to vector<24x128xf32>
      %c10 = arith.constant 10 : index
      %c0_26 = arith.constant 0 : index
      %c0_27 = arith.constant 0 : index
      %28 = vector.load %arg1[%c10, %c0_26, %c0_27] : memref<16x24x128xf32, #tpu.memory_space<vmem>>, vector<1x24x128xf32>
      %29 = vector.shape_cast %28 : vector<1x24x128xf32> to vector<24x128xf32>
      %30 = arith.subf %27, %29 : vector<24x128xf32>
      %c2 = arith.constant 2 : index
      %c0_28 = arith.constant 0 : index
      %c0_29 = arith.constant 0 : index
      %31 = vector.load %arg4[%c2, %c0_28, %c0_29] : memref<16x24x128xf32, #tpu.memory_space<vmem>>, vector<1x24x128xf32>
      %32 = vector.shape_cast %31 : vector<1x24x128xf32> to vector<24x128xf32>
      %33 = vector.shape_cast %30 : vector<24x128xf32> to vector<1x24x128xf32>
      tpu.vector_store %arg4[%c2, %c0_28, %c0_29], %33 {strides = array<i32>} : memref<16x24x128xf32, #tpu.memory_space<vmem>>, vector<1x24x128xf32>,
      %c10_30 = arith.constant 10 : index
      %c0_31 = arith.constant 0 : index
      %c0_32 = arith.constant 0 : index
      %34 = vector.load %arg1[%c10_30, %c0_31, %c0_32] : memref<16x24x128xf32, #tpu.memory_space<vmem>>, vector<1x24x128xf32>
      %35 = vector.shape_cast %34 : vector<1x24x128xf32> to vector<24x128xf32>
      %c0_33 = arith.constant 0 : index
      %c0_34 = arith.constant 0 : index
      %c0_35 = arith.constant 0 : index
      %36 = vector.load %arg1[%c0_33, %c0_34, %c0_35] : memref<16x24x128xf32, #tpu.memory_space<vmem>>, vector<1x24x128xf32>
      %37 = vector.shape_cast %36 : vector<1x24x128xf32> to vector<24x128xf32>
      %38 = arith.subf %35, %37 : vector<24x128xf32>
      %c3 = arith.constant 3 : index
      %c0_36 = arith.constant 0 : index
      %c0_37 = arith.constant 0 : index
      %39 = vector.load %arg4[%c3, %c0_36, %c0_37] : memref<16x24x128xf32, #tpu.memory_space<vmem>>, vector<1x24x128xf32>
      %40 = vector.shape_cast %39 : vector<1x24x128xf32> to vector<24x128xf32>
      %41 = vector.shape_cast %38 : vector<24x128xf32> to vector<1x24x128xf32>
      tpu.vector_store %arg4[%c3, %c0_36, %c0_37], %41 {strides = array<i32>} : memref<16x24x128xf32, #tpu.memory_space<vmem>>, vector<1x24x128xf32>,
      %c0_38 = arith.constant 0 : index
      %c0_39 = arith.constant 0 : index
      %c0_40 = arith.constant 0 : index
      %42 = vector.load %arg1[%c0_38, %c0_39, %c0_40] : memref<16x24x128xf32, #tpu.memory_space<vmem>>, vector<1x24x128xf32>
      %43 = vector.shape_cast %42 : vector<1x24x128xf32> to vector<24x128xf32>
      %c11 = arith.constant 11 : index
      %c0_41 = arith.constant 0 : index
      %c0_42 = arith.constant 0 : index
      %44 = vector.load %arg1[%c11, %c0_41, %c0_42] : memref<16x24x128xf32, #tpu.memory_space<vmem>>, vector<1x24x128xf32>
      %45 = vector.shape_cast %44 : vector<1x24x128xf32> to vector<24x128xf32>
      %46 = arith.subf %43, %45 : vector<24x128xf32>
      %c4 = arith.constant 4 : index
      %c0_43 = arith.constant 0 : index
      %c0_44 = arith.constant 0 : index
      %47 = vector.load %arg4[%c4, %c0_43, %c0_44] : memref<16x24x128xf32, #tpu.memory_space<vmem>>, vector<1x24x128xf32>
      %48 = vector.shape_cast %47 : vector<1x24x128xf32> to vector<24x128xf32>
      %49 = vector.shape_cast %46 : vector<24x128xf32> to vector<1x24x128xf32>
      tpu.vector_store %arg4[%c4, %c0_43, %c0_44], %49 {strides = array<i32>} : memref<16x24x128xf32, #tpu.memory_space<vmem>>, vector<1x24x128xf32>,
      %c11_45 = arith.constant 11 : index
      %c0_46 = arith.constant 0 : index
      %c0_47 = arith.constant 0 : index
      %50 = vector.load %arg1[%c11_45, %c0_46, %c0_47] : memref<16x24x128xf32, #tpu.memory_space<vmem>>, vector<1x24x128xf32>
      %51 = vector.shape_cast %50 : vector<1x24x128xf32> to vector<24x128xf32>
      %c0_48 = arith.constant 0 : index
      %c0_49 = arith.constant 0 : index
      %c0_50 = arith.constant 0 : index
      %52 = vector.load %arg1[%c0_48, %c0_49, %c0_50] : memref<16x24x128xf32, #tpu.memory_space<vmem>>, vector<1x24x128xf32>
      %53 = vector.shape_cast %52 : vector<1x24x128xf32> to vector<24x128xf32>
      %54 = arith.subf %51, %53 : vector<24x128xf32>
      %c5 = arith.constant 5 : index
      %c0_51 = arith.constant 0 : index
      %c0_52 = arith.constant 0 : index
      %55 = vector.load %arg4[%c5, %c0_51, %c0_52] : memref<16x24x128xf32, #tpu.memory_space<vmem>>, vector<1x24x128xf32>
      %56 = vector.shape_cast %55 : vector<1x24x128xf32> to vector<24x128xf32>
      %57 = vector.shape_cast %54 : vector<24x128xf32> to vector<1x24x128xf32>
      tpu.vector_store %arg4[%c5, %c0_51, %c0_52], %57 {strides = array<i32>} : memref<16x24x128xf32, #tpu.memory_space<vmem>>, vector<1x24x128xf32>,
      %c0_53 = arith.constant 0 : index
      %c0_54 = arith.constant 0 : index
      %c0_55 = arith.constant 0 : index
      %58 = vector.load %arg1[%c0_53, %c0_54, %c0_55] : memref<16x24x128xf32, #tpu.memory_space<vmem>>, vector<1x24x128xf32>
      %59 = vector.shape_cast %58 : vector<1x24x128xf32> to vector<24x128xf32>
      %c12 = arith.constant 12 : index
      %c0_56 = arith.constant 0 : index
      %c0_57 = arith.constant 0 : index
      %60 = vector.load %arg1[%c12, %c0_56, %c0_57] : memref<16x24x128xf32, #tpu.memory_space<vmem>>, vector<1x24x128xf32>
      %61 = vector.shape_cast %60 : vector<1x24x128xf32> to vector<24x128xf32>
      %62 = arith.subf %59, %61 : vector<24x128xf32>
      %c6 = arith.constant 6 : index
      %c0_58 = arith.constant 0 : index
      %c0_59 = arith.constant 0 : index
      %63 = vector.load %arg4[%c6, %c0_58, %c0_59] : memref<16x24x128xf32, #tpu.memory_space<vmem>>, vector<1x24x128xf32>
      %64 = vector.shape_cast %63 : vector<1x24x128xf32> to vector<24x128xf32>
      %65 = vector.shape_cast %62 : vector<24x128xf32> to vector<1x24x128xf32>
      tpu.vector_store %arg4[%c6, %c0_58, %c0_59], %65 {strides = array<i32>} : memref<16x24x128xf32, #tpu.memory_space<vmem>>, vector<1x24x128xf32>,
      %c12_60 = arith.constant 12 : index
      %c0_61 = arith.constant 0 : index
      %c0_62 = arith.constant 0 : index
      %66 = vector.load %arg1[%c12_60, %c0_61, %c0_62] : memref<16x24x128xf32, #tpu.memory_space<vmem>>, vector<1x24x128xf32>
      %67 = vector.shape_cast %66 : vector<1x24x128xf32> to vector<24x128xf32>
      %c0_63 = arith.constant 0 : index
      %c0_64 = arith.constant 0 : index
      %c0_65 = arith.constant 0 : index
      %68 = vector.load %arg1[%c0_63, %c0_64, %c0_65] : memref<16x24x128xf32, #tpu.memory_space<vmem>>, vector<1x24x128xf32>
      %69 = vector.shape_cast %68 : vector<1x24x128xf32> to vector<24x128xf32>
      %70 = arith.subf %67, %69 : vector<24x128xf32>
      %c7 = arith.constant 7 : index
      %c0_66 = arith.constant 0 : index
      %c0_67 = arith.constant 0 : index
      %71 = vector.load %arg4[%c7, %c0_66, %c0_67] : memref<16x24x128xf32, #tpu.memory_space<vmem>>, vector<1x24x128xf32>
      %72 = vector.shape_cast %71 : vector<1x24x128xf32> to vector<24x128xf32>
      %73 = vector.shape_cast %70 : vector<24x128xf32> to vector<1x24x128xf32>
      tpu.vector_store %arg4[%c7, %c0_66, %c0_67], %73 {strides = array<i32>} : memref<16x24x128xf32, #tpu.memory_space<vmem>>, vector<1x24x128xf32>,
      %c0_68 = arith.constant 0 : index
      %c0_69 = arith.constant 0 : index
      %c0_70 = arith.constant 0 : index
      %74 = vector.load %arg1[%c0_68, %c0_69, %c0_70] : memref<16x24x128xf32, #tpu.memory_space<vmem>>, vector<1x24x128xf32>
      %75 = vector.shape_cast %74 : vector<1x24x128xf32> to vector<24x128xf32>
      %c13 = arith.constant 13 : index
      %c0_71 = arith.constant 0 : index
      %c0_72 = arith.constant 0 : index
      %76 = vector.load %arg1[%c13, %c0_71, %c0_72] : memref<16x24x128xf32, #tpu.memory_space<vmem>>, vector<1x24x128xf32>
      %77 = vector.shape_cast %76 : vector<1x24x128xf32> to vector<24x128xf32>
      %78 = arith.subf %75, %77 : vector<24x128xf32>
      %c8 = arith.constant 8 : index
      %c0_73 = arith.constant 0 : index
      %c0_74 = arith.constant 0 : index
      %79 = vector.load %arg4[%c8, %c0_73, %c0_74] : memref<16x24x128xf32, #tpu.memory_space<vmem>>, vector<1x24x128xf32>
      %80 = vector.shape_cast %79 : vector<1x24x128xf32> to vector<24x128xf32>
      %81 = vector.shape_cast %78 : vector<24x128xf32> to vector<1x24x128xf32>
      tpu.vector_store %arg4[%c8, %c0_73, %c0_74], %81 {strides = array<i32>} : memref<16x24x128xf32, #tpu.memory_space<vmem>>, vector<1x24x128xf32>,
      %c13_75 = arith.constant 13 : index
      %c0_76 = arith.constant 0 : index
      %c0_77 = arith.constant 0 : index
      %82 = vector.load %arg1[%c13_75, %c0_76, %c0_77] : memref<16x24x128xf32, #tpu.memory_space<vmem>>, vector<1x24x128xf32>
      %83 = vector.shape_cast %82 : vector<1x24x128xf32> to vector<24x128xf32>
      %c0_78 = arith.constant 0 : index
      %c0_79 = arith.constant 0 : index
      %c0_80 = arith.constant 0 : index
      %84 = vector.load %arg1[%c0_78, %c0_79, %c0_80] : memref<16x24x128xf32, #tpu.memory_space<vmem>>, vector<1x24x128xf32>
      %85 = vector.shape_cast %84 : vector<1x24x128xf32> to vector<24x128xf32>
      %86 = arith.subf %83, %85 : vector<24x128xf32>
      %c9_81 = arith.constant 9 : index
      %c0_82 = arith.constant 0 : index
      %c0_83 = arith.constant 0 : index
      %87 = vector.load %arg4[%c9_81, %c0_82, %c0_83] : memref<16x24x128xf32, #tpu.memory_space<vmem>>, vector<1x24x128xf32>
      %88 = vector.shape_cast %87 : vector<1x24x128xf32> to vector<24x128xf32>
      %89 = vector.shape_cast %86 : vector<24x128xf32> to vector<1x24x128xf32>
      tpu.vector_store %arg4[%c9_81, %c0_82, %c0_83], %89 {strides = array<i32>} : memref<16x24x128xf32, #tpu.memory_space<vmem>>, vector<1x24x128xf32>,
      %c0_84 = arith.constant 0 : index
      %c0_85 = arith.constant 0 : index
      %c0_86 = arith.constant 0 : index
      %90 = vector.load %arg1[%c0_84, %c0_85, %c0_86] : memref<16x24x128xf32, #tpu.memory_space<vmem>>, vector<1x24x128xf32>
      %91 = vector.shape_cast %90 : vector<1x24x128xf32> to vector<24x128xf32>
      %c14 = arith.constant 14 : index
      %c0_87 = arith.constant 0 : index
      %c0_88 = arith.constant 0 : index
      %92 = vector.load %arg1[%c14, %c0_87, %c0_88] : memref<16x24x128xf32, #tpu.memory_space<vmem>>, vector<1x24x128xf32>
      %93 = vector.shape_cast %92 : vector<1x24x128xf32> to vector<24x128xf32>
      %94 = arith.subf %91, %93 : vector<24x128xf32>
      %c10_89 = arith.constant 10 : index
      %c0_90 = arith.constant 0 : index
      %c0_91 = arith.constant 0 : index
      %95 = vector.load %arg4[%c10_89, %c0_90, %c0_91] : memref<16x24x128xf32, #tpu.memory_space<vmem>>, vector<1x24x128xf32>
      %96 = vector.shape_cast %95 : vector<1x24x128xf32> to vector<24x128xf32>
      %97 = vector.shape_cast %94 : vector<24x128xf32> to vector<1x24x128xf32>
      tpu.vector_store %arg4[%c10_89, %c0_90, %c0_91], %97 {strides = array<i32>} : memref<16x24x128xf32, #tpu.memory_space<vmem>>, vector<1x24x128xf32>,
      %c14_92 = arith.constant 14 : index
      %c0_93 = arith.constant 0 : index
      %c0_94 = arith.constant 0 : index
      %98 = vector.load %arg1[%c14_92, %c0_93, %c0_94] : memref<16x24x128xf32, #tpu.memory_space<vmem>>, vector<1x24x128xf32>
      %99 = vector.shape_cast %98 : vector<1x24x128xf32> to vector<24x128xf32>
      %c0_95 = arith.constant 0 : index
      %c0_96 = arith.constant 0 : index
      %c0_97 = arith.constant 0 : index
      %100 = vector.load %arg1[%c0_95, %c0_96, %c0_97] : memref<16x24x128xf32, #tpu.memory_space<vmem>>, vector<1x24x128xf32>
      %101 = vector.shape_cast %100 : vector<1x24x128xf32> to vector<24x128xf32>
      %102 = arith.subf %99, %101 : vector<24x128xf32>
      %c11_98 = arith.constant 11 : index
      %c0_99 = arith.constant 0 : index
      %c0_100 = arith.constant 0 : index
      %103 = vector.load %arg4[%c11_98, %c0_99, %c0_100] : memref<16x24x128xf32, #tpu.memory_space<vmem>>, vector<1x24x128xf32>
      %104 = vector.shape_cast %103 : vector<1x24x128xf32> to vector<24x128xf32>
      %105 = vector.shape_cast %102 : vector<24x128xf32> to vector<1x24x128xf32>
      tpu.vector_store %arg4[%c11_98, %c0_99, %c0_100], %105 {strides = array<i32>} : memref<16x24x128xf32, #tpu.memory_space<vmem>>, vector<1x24x128xf32>,
      %c0_101 = arith.constant 0 : index
      %c0_102 = arith.constant 0 : index
      %c0_103 = arith.constant 0 : index
      %106 = vector.load %arg1[%c0_101, %c0_102, %c0_103] : memref<16x24x128xf32, #tpu.memory_space<vmem>>, vector<1x24x128xf32>
      %107 = vector.shape_cast %106 : vector<1x24x128xf32> to vector<24x128xf32>
      %c15 = arith.constant 15 : index
      %c0_104 = arith.constant 0 : index
      %c0_105 = arith.constant 0 : index
      %108 = vector.load %arg1[%c15, %c0_104, %c0_105] : memref<16x24x128xf32, #tpu.memory_space<vmem>>, vector<1x24x128xf32>
      %109 = vector.shape_cast %108 : vector<1x24x128xf32> to vector<24x128xf32>
      %110 = arith.subf %107, %109 : vector<24x128xf32>
      %c12_106 = arith.constant 12 : index
      %c0_107 = arith.constant 0 : index
      %c0_108 = arith.constant 0 : index
      %111 = vector.load %arg4[%c12_106, %c0_107, %c0_108] : memref<16x24x128xf32, #tpu.memory_space<vmem>>, vector<1x24x128xf32>
      %112 = vector.shape_cast %111 : vector<1x24x128xf32> to vector<24x128xf32>
      %113 = vector.shape_cast %110 : vector<24x128xf32> to vector<1x24x128xf32>
      tpu.vector_store %arg4[%c12_106, %c0_107, %c0_108], %113 {strides = array<i32>} : memref<16x24x128xf32, #tpu.memory_space<vmem>>, vector<1x24x128xf32>,
      %c15_109 = arith.constant 15 : index
      %c0_110 = arith.constant 0 : index
      %c0_111 = arith.constant 0 : index
      %114 = vector.load %arg1[%c15_109, %c0_110, %c0_111] : memref<16x24x128xf32, #tpu.memory_space<vmem>>, vector<1x24x128xf32>
      %115 = vector.shape_cast %114 : vector<1x24x128xf32> to vector<24x128xf32>
      %c0_112 = arith.constant 0 : index
      %c0_113 = arith.constant 0 : index
      %c0_114 = arith.constant 0 : index
      %116 = vector.load %arg1[%c0_112, %c0_113, %c0_114] : memref<16x24x128xf32, #tpu.memory_space<vmem>>, vector<1x24x128xf32>
      %117 = vector.shape_cast %116 : vector<1x24x128xf32> to vector<24x128xf32>
      %118 = arith.subf %115, %117 : vector<24x128xf32>
      %c13_115 = arith.constant 13 : index
      %c0_116 = arith.constant 0 : index
      %c0_117 = arith.constant 0 : index
      %119 = vector.load %arg4[%c13_115, %c0_116, %c0_117] : memref<16x24x128xf32, #tpu.memory_space<vmem>>, vector<1x24x128xf32>
      %120 = vector.shape_cast %119 : vector<1x24x128xf32> to vector<24x128xf32>
      %121 = vector.shape_cast %118 : vector<24x128xf32> to vector<1x24x128xf32>
      tpu.vector_store %arg4[%c13_115, %c0_116, %c0_117], %121 {strides = array<i32>} : memref<16x24x128xf32, #tpu.memory_space<vmem>>, vector<1x24x128xf32>,
      %c11_118 = arith.constant 11 : index
      %c0_119 = arith.constant 0 : index
      %c0_120 = arith.constant 0 : index
      %122 = vector.load %arg1[%c11_118, %c0_119, %c0_120] : memref<16x24x128xf32, #tpu.memory_space<vmem>>, vector<1x24x128xf32>
      %123 = vector.shape_cast %122 : vector<1x24x128xf32> to vector<24x128xf32>
      %c14_121 = arith.constant 14 : index
      %c0_122 = arith.constant 0 : index
      %c0_123 = arith.constant 0 : index
      %124 = vector.load %arg1[%c14_121, %c0_122, %c0_123] : memref<16x24x128xf32, #tpu.memory_space<vmem>>, vector<1x24x128xf32>
      %125 = vector.shape_cast %124 : vector<1x24x128xf32> to vector<24x128xf32>
      %126 = arith.subf %123, %125 : vector<24x128xf32>
      %c14_124 = arith.constant 14 : index
      %c0_125 = arith.constant 0 : index
      %c0_126 = arith.constant 0 : index
      %127 = vector.load %arg4[%c14_124, %c0_125, %c0_126] : memref<16x24x128xf32, #tpu.memory_space<vmem>>, vector<1x24x128xf32>
      %128 = vector.shape_cast %127 : vector<1x24x128xf32> to vector<24x128xf32>
      %129 = vector.shape_cast %126 : vector<24x128xf32> to vector<1x24x128xf32>
      tpu.vector_store %arg4[%c14_124, %c0_125, %c0_126], %129 {strides = array<i32>} : memref<16x24x128xf32, #tpu.memory_space<vmem>>, vector<1x24x128xf32>,
      %c15_127 = arith.constant 15 : index
      %c0_128 = arith.constant 0 : index
      %c0_129 = arith.constant 0 : index
      %130 = vector.load %arg1[%c15_127, %c0_128, %c0_129] : memref<16x24x128xf32, #tpu.memory_space<vmem>>, vector<1x24x128xf32>
      %131 = vector.shape_cast %130 : vector<1x24x128xf32> to vector<24x128xf32>
      %c14_130 = arith.constant 14 : index
      %c0_131 = arith.constant 0 : index
      %c0_132 = arith.constant 0 : index
      %132 = vector.load %arg1[%c14_130, %c0_131, %c0_132] : memref<16x24x128xf32, #tpu.memory_space<vmem>>, vector<1x24x128xf32>
      %133 = vector.shape_cast %132 : vector<1x24x128xf32> to vector<24x128xf32>
      %134 = arith.subf %131, %133 : vector<24x128xf32>
      %c15_133 = arith.constant 15 : index
      %c0_134 = arith.constant 0 : index
      %c0_135 = arith.constant 0 : index
      %135 = vector.load %arg4[%c15_133, %c0_134, %c0_135] : memref<16x24x128xf32, #tpu.memory_space<vmem>>, vector<1x24x128xf32>
      %136 = vector.shape_cast %135 : vector<1x24x128xf32> to vector<24x128xf32>
      %137 = vector.shape_cast %134 : vector<24x128xf32> to vector<1x24x128xf32>
      tpu.vector_store %arg4[%c15_133, %c0_134, %c0_135], %137 {strides = array<i32>} : memref<16x24x128xf32, #tpu.memory_space<vmem>>, vector<1x24x128xf32>,
    } else {
    }
    return
  }
  func.func @transform_0(%arg0: i32) -> (i32, i32, i32) {
    %c0_i32 = arith.constant 0 : i32
    %c0_i32_0 = arith.constant 0 : i32
    %c0_i32_1 = arith.constant 0 : i32
    %c0_i32_2 = arith.constant 0 : i32
    return %c0_i32, %c0_i32_0, %c0_i32_1 : i32, i32, i32
  }
  func.func @transform_1(%arg0: i32) -> (i32, i32) {
    %c0_i32 = arith.constant 0 : i32
    %c0_i32_0 = arith.constant 0 : i32
    return %arg0, %c0_i32 : i32, i32
  }
  func.func @transform_2(%arg0: i32) -> (i32, i32) {
    %c0_i32 = arith.constant 0 : i32
    %c0_i32_0 = arith.constant 0 : i32
    return %arg0, %c0_i32 : i32, i32
  }
  func.func @transform_3(%arg0: i32) -> (i32, i32, i32) {
    %c0_i32 = arith.constant 0 : i32
    %c0_i32_0 = arith.constant 0 : i32
    %c0_i32_1 = arith.constant 0 : i32
    return %arg0, %c0_i32, %c0_i32_0 : i32, i32, i32
  }
  func.func @transform_4(%arg0: i32) -> (i32, i32) {
    %c0_i32 = arith.constant 0 : i32
    %c0_i32_0 = arith.constant 0 : i32
    return %arg0, %c0_i32 : i32, i32
  }
}

</mosaic_0001>

<llo_original>
// kernel: model_forward.1
$region0: #{model_forward.1}
  #allocation0 [shape = 'u32[]', space=smem, size = 0x4, offset = 0x4, fixed_abs, tag = 'smem constant byte address 0x4 - core index']
  #allocation1 [shape = 'u32[72,128]{1,0:T(1,128)}', space=vmem, size = 0x9000, scoped, tag = 'internal scratch']
  %s0 = inlined_call_operand.vmem [shape: f32[16,24,128], index: 0, kind: input, shape index: {}]
  %s1 = inlined_call_operand.vmem [shape: f32[32,1024], index: 1, kind: input, shape index: {}]
  %s2 = inlined_call_operand.vmem [shape: f32[32,1024], index: 2, kind: input, shape index: {}]
  %s3 = inlined_call_operand.vmem [shape: f32[32,24,128], index: 3, kind: output, shape index: {0}]
  %s4 = inlined_call_operand.vmem [shape: f32[32,1024], index: 4, kind: output, shape index: {1}]
  %5 = xla_tuple %s3, %s4
  %s6 = sld [smem:[#allocation0]]
  $region61: #{model_forward.1} parent=0
    _
  %s8 = ssub.s32 1, %s6
  %s9 = scalar_select 0, %s8, %s6
  loop: start=0, step=1, limit=4
  $region2: #{model_forward.1} parent=0 // loop_pre_header
    _
  $region3: #{model_forward.1} parent=0 // loop_header
    %s11 = sphi 0, %s15
    %p12 = scmp.ge.s32.totalorder %s11, 4
    %s19 = sphi 0, %s19
    %s21 = sphi 0, %s19
    %s22 = sphi 0, %s21
    %s36 = sphi 0, %s22
    %s42 = sphi 0, %s44
    %s45 = sphi 0, %s42
    %s46 = sphi 0, %s45
    %s62 = sphi 0, %s46
    %s68 = sphi 0, %s70
    %s71 = sphi 0, %s68
    %s72 = sphi 0, %s71
    %s88 = sphi 0, %s72
    %s94 = sphi 0, %s96
    %s97 = sphi 0, %s94
    %s98 = sphi 0, %s97
    %s114 = sphi 0, %s98
    %s120 = sphi 0, %s122
    %s123 = sphi 0, %s120
    %s124 = sphi 0, %s123
    %s140 = sphi 0, %s124
  $region4: #{model_forward.1} parent=0 // loop_header_branch
    %14 = sbr.rel (%p12) target = $region8
  $region5: #{model_forward.1} parent=0 // loop_body
    %s16 = ssub.s32 %s11, 1
    %s17 = ssub.s32 %s11, 2
    %s18 = sadd.s32 %s11, 1
    %s20 = sadd.s32 %s19, 1
    %p23 = scmp.eq.s32.totalorder %s11, 1
    %p24 = scmp.ne.s32.totalorder %s19, %s21
    %p25 = scmp.eq.s32.totalorder %s11, 0
    %p26 = por %p24, %p25
    %p27 = scmp.ne.s32.totalorder %s19, %s21
    %p28 = scmp.eq.s32.totalorder %s16, 1
    %p29 = por %p27, %p28
    %p30 = scmp.ne.s32.totalorder %s21, %s22
    %p31 = scmp.eq.s32.totalorder %s16, 0
    %p32 = por %p30, %p31
    %p33 = scmp.ne.s32.totalorder %s21, %s22
    %p34 = scmp.eq.s32.totalorder %s17, 1
    %p35 = por %p33, %p34
    %p37 = scmp.ne.s32.totalorder %s22, %s36
    %p38 = scmp.eq.s32.totalorder %s17, 0
    %p39 = por %p37, %p38
    %s40 = ssub.s32 %s11, %s18
    %p41 = scmp.eq.s32.totalorder %s40, 0
    %s43 = sadd.s32 %s42, 1
    %s44 = scalar_select %p41, %s42, %s43
    %p47 = pneg %p41
    %p48 = scmp.eq.s32.totalorder %s11, 1
    %p49 = por %p47, %p48
    %p50 = scmp.ne.s32.totalorder %s42, %s45
    %p51 = scmp.eq.s32.totalorder %s11, 0
    %p52 = por %p50, %p51
    %p53 = scmp.ne.s32.totalorder %s42, %s45
    %p54 = scmp.eq.s32.totalorder %s16, 1
    %p55 = por %p53, %p54
    %p56 = scmp.ne.s32.totalorder %s45, %s46
    %p57 = scmp.eq.s32.totalorder %s16, 0
    %p58 = por %p56, %p57
    %p59 = scmp.ne.s32.totalorder %s45, %s46
    %p60 = scmp.eq.s32.totalorder %s17, 1
    %p61 = por %p59, %p60
    %p63 = scmp.ne.s32.totalorder %s46, %s62
    %p64 = scmp.eq.s32.totalorder %s17, 0
    %p65 = por %p63, %p64
    %s66 = ssub.s32 %s11, %s18
    %p67 = scmp.eq.s32.totalorder %s66, 0
    %s69 = sadd.s32 %s68, 1
    %s70 = scalar_select %p67, %s68, %s69
    %p73 = pneg %p67
    %p74 = scmp.eq.s32.totalorder %s11, 1
    %p75 = por %p73, %p74
    %p76 = scmp.ne.s32.totalorder %s68, %s71
    %p77 = scmp.eq.s32.totalorder %s11, 0
    %p78 = por %p76, %p77
    %p79 = scmp.ne.s32.totalorder %s68, %s71
    %p80 = scmp.eq.s32.totalorder %s16, 1
    %p81 = por %p79, %p80
    %p82 = scmp.ne.s32.totalorder %s71, %s72
    %p83 = scmp.eq.s32.totalorder %s16, 0
    %p84 = por %p82, %p83
    %p85 = scmp.ne.s32.totalorder %s71, %s72
    %p86 = scmp.eq.s32.totalorder %s17, 1
    %p87 = por %p85, %p86
    %p89 = scmp.ne.s32.totalorder %s72, %s88
    %p90 = scmp.eq.s32.totalorder %s17, 0
    %p91 = por %p89, %p90
    %s92 = ssub.s32 %s11, %s18
    %p93 = scmp.eq.s32.totalorder %s92, 0
    %s95 = sadd.s32 %s94, 1
    %s96 = scalar_select %p93, %s94, %s95
    %p99 = pneg %p93
    %p100 = scmp.eq.s32.totalorder %s11, 1
    %p101 = por %p99, %p100
    %p102 = scmp.ne.s32.totalorder %s94, %s97
    %p103 = scmp.eq.s32.totalorder %s11, 0
    %p104 = por %p102, %p103
    %p105 = scmp.ne.s32.totalorder %s94, %s97
    %p106 = scmp.eq.s32.totalorder %s16, 1
    %p107 = por %p105, %p106
    %p108 = scmp.ne.s32.totalorder %s97, %s98
    %p109 = scmp.eq.s32.totalorder %s16, 0
    %p110 = por %p108, %p109
    %p111 = scmp.ne.s32.totalorder %s97, %s98
    %p112 = scmp.eq.s32.totalorder %s17, 1
    %p113 = por %p111, %p112
    %p115 = scmp.ne.s32.totalorder %s98, %s114
    %p116 = scmp.eq.s32.totalorder %s17, 0
    %p117 = por %p115, %p116
    %s118 = ssub.s32 %s11, %s18
    %p119 = scmp.eq.s32.totalorder %s118, 0
    %s121 = sadd.s32 %s120, 1
    %s122 = scalar_select %p119, %s120, %s121
    %p125 = pneg %p119
    %p126 = scmp.eq.s32.totalorder %s11, 1
    %p127 = por %p125, %p126
    %p128 = scmp.ne.s32.totalorder %s120, %s123
    %p129 = scmp.eq.s32.totalorder %s11, 0
    %p130 = por %p128, %p129
    %p131 = scmp.ne.s32.totalorder %s120, %s123
    %p132 = scmp.eq.s32.totalorder %s16, 1
    %p133 = por %p131, %p132
    %p134 = scmp.ne.s32.totalorder %s123, %s124
    %p135 = scmp.eq.s32.totalorder %s16, 0
    %p136 = por %p134, %p135
    %p137 = scmp.ne.s32.totalorder %s123, %s124
    %p138 = scmp.eq.s32.totalorder %s17, 1
    %p139 = por %p137, %p138
    %p141 = scmp.ne.s32.totalorder %s124, %s140
    %p142 = scmp.eq.s32.totalorder %s17, 0
    %p143 = por %p141, %p142
    %p144 = scmp.le.s32.totalorder 1, %s11
    %p145 = scmp.lt.s32.totalorder %s11, 3
    %p146 = pnand %p144, %p145
    %p147 = pneg %p146
    // Predicated region
    $region9: #{model_forward.1} parent=5 // pred_check
      _
    $region10: #{model_forward.1} parent=5 // pred_check_branch
      %149 = sbr.rel (%p146) target = $region12
    $region11: #{model_forward.1} parent=5 // pred_region
      %s150 = ssub.s32 %s11, 1
      // Predicated region
      $region13: #{model_forward.1} parent=11 // pred_check
        %p151 = pneg %p32
      $region14: #{model_forward.1} parent=11 // pred_check_branch
        %153 = sbr.rel (%p151) target = $region16
      $region15: #{model_forward.1} parent=11 // pred_region
        _
      $region16: #{model_forward.1} parent=11 // pred_fallthru
        _
    $region12: #{model_forward.1} parent=5 // pred_fallthru
      _
    %p154 = scmp.lt.s32.totalorder %s11, 2
    // Predicated region
    $region17: #{model_forward.1} parent=5 // pred_check
      %p155 = pneg %p154
    $region18: #{model_forward.1} parent=5 // pred_check_branch
      %157 = sbr.rel (%p155) target = $region20
    $region19: #{model_forward.1} parent=5 // pred_region
      // Predicated region
      $region21: #{model_forward.1} parent=19 // pred_check
        %p158 = pneg %p52
      $region22: #{model_forward.1} parent=19 // pred_check_branch
        %160 = sbr.rel (%p158) target = $region24
      $region23: #{model_forward.1} parent=19 // pred_region
        %s161 = smul.u32 2, %s11
        %p162 = scmp.lt.s32.totalorder %s161, 3
        %s163 = scalar_select %p162, %s161, 3
        %s164 = smul.addr %s163, 8
        %s165 = smul.addr %s164, 8
        %s166 = scalar_lea.vmem %s1, %s165
        %s167 = smul.u32 2, %s11
      $region24: #{model_forward.1} parent=19 // pred_fallthru
        _
      // Predicated region
      $region25: #{model_forward.1} parent=19 // pred_check
        %p168 = pneg %p78
      $region26: #{model_forward.1} parent=19 // pred_check_branch
        %170 = sbr.rel (%p168) target = $region28
      $region27: #{model_forward.1} parent=19 // pred_region
        %s171 = smul.u32 2, %s11
        %p172 = scmp.lt.s32.totalorder %s171, 3
        %s173 = scalar_select %p172, %s171, 3
        %s174 = smul.addr %s173, 8
        %s175 = smul.addr %s174, 8
        %s176 = scalar_lea.vmem %s2, %s175
        %s177 = smul.u32 2, %s11
      $region28: #{model_forward.1} parent=19 // pred_fallthru
        _
    $region20: #{model_forward.1} parent=5 // pred_fallthru
      _
    %p178 = scmp.le.s32.totalorder 1, %s11
    %p179 = scmp.lt.s32.totalorder %s11, 3
    %p180 = pnand %p178, %p179
    %p181 = pneg %p180
    // Predicated region
    $region29: #{model_forward.1} parent=5 // pred_check
      _
    $region30: #{model_forward.1} parent=5 // pred_check_branch
      %183 = sbr.rel (%p180) target = $region32
    $region31: #{model_forward.1} parent=5 // pred_region
      %s184 = ssub.s32 %s11, 1
      %p185 = pneg %p32
      %p186 = pneg %p29
      %s187 = smul.u32 2, %s16
      %p188 = scmp.lt.s32.totalorder %s187, 3
      %s189 = scalar_select %p188, %s187, 3
      %s190 = smul.addr %s189, 8
      %s191 = smul.addr %s190, 8
      %s192 = scalar_lea.vmem %s1, %s191
      %p193 = pneg %p58
      %p194 = pneg %p55
      %s195 = smul.u32 2, %s16
      %p196 = scmp.lt.s32.totalorder %s195, 3
      %s197 = scalar_select %p196, %s195, 3
      %s198 = smul.addr %s197, 8
      %s199 = smul.addr %s198, 8
      %s200 = scalar_lea.vmem %s2, %s199
      %p201 = pneg %p84
      %p202 = pneg %p81
      %p203 = pneg %p110
      %p204 = pneg %p107
      %s205 = smul.u32 16, %s16
      %p206 = scmp.lt.s32.totalorder %s205, 31
      %s207 = scalar_select %p206, %s205, 31
      %s208 = smul.addr %s207, 3
      %s209 = smul.addr %s208, 8
      %s210 = scalar_lea.vmem %s3, %s209
      %p211 = pneg %p136
      %p212 = pneg %p133
      %s213 = smul.u32 2, %s16
      %p214 = scmp.lt.s32.totalorder %s213, 3
      %s215 = scalar_select %p214, %s213, 3
      %s216 = smul.addr %s215, 8
      %s217 = smul.addr %s216, 8
      %s218 = scalar_lea.vmem %s4, %s217
      %s219 = smul.u32 2, %s16
      %p220 = scmp.lt.s32.totalorder %s219, 3
      %s221 = scalar_select %p220, %s219, 3
      %s222 = smul.addr %s221, 8
      %s223 = smul.addr %s222, 8
      %s224 = scalar_lea.vmem %s1, %s223
      %s225 = smul.u32 2, %s16
      %s226 = smul.u32 2, %s16
      %p227 = scmp.lt.s32.totalorder %s226, 3
      %s228 = scalar_select %p227, %s226, 3
      %s229 = smul.addr %s228, 8
      %s230 = smul.addr %s229, 8
      %s231 = scalar_lea.vmem %s2, %s230
      %s232 = smul.u32 2, %s16
      %s233 = smul.u32 16, %s16
      %p234 = scmp.lt.s32.totalorder %s233, 31
      %s235 = scalar_select %p234, %s233, 31
      %s236 = smul.addr %s235, 3
      %s237 = smul.addr %s236, 8
      %s238 = scalar_lea.vmem %s3, %s237
      %s239 = smul.u32 16, %s16
      %s240 = smul.u32 2, %s16
      %p241 = scmp.lt.s32.totalorder %s240, 3
      %s242 = scalar_select %p241, %s240, 3
      %s243 = smul.addr %s242, 8
      %s244 = smul.addr %s243, 8
      %s245 = scalar_lea.vmem %s4, %s244
      %s246 = smul.u32 2, %s16
      %v247 = vld [vmem:[%s224] sm:$0xff]
      %v248 = vld [vmem:[%s224 + $0x8] sm:$0xff]
      %v249 = vld [vmem:[%s224 + $0x10] sm:$0xff]
      %v250 = vld [vmem:[%s224 + $0x18] sm:$0xff]
      %v251 = vld [vmem:[%s224 + $0x20] sm:$0xff]
      %v252 = vld [vmem:[%s224 + $0x28] sm:$0xff]
      %v253 = vld [vmem:[%s224 + $0x30] sm:$0xff]
      %v254 = vld [vmem:[%s224 + $0x38] sm:$0xff]
      %v255 = vld [vmem:[%s224 + $0x40] sm:$0xff]
      %v256 = vld [vmem:[%s224 + $0x48] sm:$0xff]
      %v257 = vld [vmem:[%s224 + $0x50] sm:$0xff]
      %v258 = vld [vmem:[%s224 + $0x58] sm:$0xff]
      %v259 = vld [vmem:[%s224 + $0x60] sm:$0xff]
      %v260 = vld [vmem:[%s224 + $0x68] sm:$0xff]
      %v261 = vld [vmem:[%s224 + $0x70] sm:$0xff]
      %v262 = vld [vmem:[%s224 + $0x78] sm:$0xff]
      %v263 = vld [vmem:[%s231] sm:$0xff]
      %v264 = vld [vmem:[%s231 + $0x8] sm:$0xff]
      %v265 = vld [vmem:[%s231 + $0x10] sm:$0xff]
      %v266 = vld [vmem:[%s231 + $0x18] sm:$0xff]
      %v267 = vld [vmem:[%s231 + $0x20] sm:$0xff]
      %v268 = vld [vmem:[%s231 + $0x28] sm:$0xff]
      %v269 = vld [vmem:[%s231 + $0x30] sm:$0xff]
      %v270 = vld [vmem:[%s231 + $0x38] sm:$0xff]
      %v271 = vld [vmem:[%s231 + $0x40] sm:$0xff]
      %v272 = vld [vmem:[%s231 + $0x48] sm:$0xff]
      %v273 = vld [vmem:[%s231 + $0x50] sm:$0xff]
      %v274 = vld [vmem:[%s231 + $0x58] sm:$0xff]
      %v275 = vld [vmem:[%s231 + $0x60] sm:$0xff]
      %v276 = vld [vmem:[%s231 + $0x68] sm:$0xff]
      %v277 = vld [vmem:[%s231 + $0x70] sm:$0xff]
      %v278 = vld [vmem:[%s231 + $0x78] sm:$0xff]
      %v279 = vsub.f32 %v247, %v263
      %v280 = vsub.f32 %v248, %v264
      %v281 = vsub.f32 %v249, %v265
      %v282 = vsub.f32 %v250, %v266
      %v283 = vsub.f32 %v251, %v267
      %v284 = vsub.f32 %v252, %v268
      %v285 = vsub.f32 %v253, %v269
      %v286 = vsub.f32 %v254, %v270
      %v287 = vsub.f32 %v255, %v271
      %v288 = vsub.f32 %v256, %v272
      %v289 = vsub.f32 %v257, %v273
      %v290 = vsub.f32 %v258, %v274
      %v291 = vsub.f32 %v259, %v275
      %v292 = vsub.f32 %v260, %v276
      %v293 = vsub.f32 %v261, %v277
      %v294 = vsub.f32 %v262, %v278
      %295 = vst [vmem:[%s245] sm:$0xff] %v279
      %296 = vst [vmem:[%s245 + $0x8] sm:$0xff] %v280
      %297 = vst [vmem:[%s245 + $0x10] sm:$0xff] %v281
      %298 = vst [vmem:[%s245 + $0x18] sm:$0xff] %v282
      %299 = vst [vmem:[%s245 + $0x20] sm:$0xff] %v283
      %300 = vst [vmem:[%s245 + $0x28] sm:$0xff] %v284
      %301 = vst [vmem:[%s245 + $0x30] sm:$0xff] %v285
      %302 = vst [vmem:[%s245 + $0x38] sm:$0xff] %v286
      %303 = vst [vmem:[%s245 + $0x40] sm:$0xff] %v287
      %304 = vst [vmem:[%s245 + $0x48] sm:$0xff] %v288
      %305 = vst [vmem:[%s245 + $0x50] sm:$0xff] %v289
      %306 = vst [vmem:[%s245 + $0x58] sm:$0xff] %v290
      %307 = vst [vmem:[%s245 + $0x60] sm:$0xff] %v291
      %308 = vst [vmem:[%s245 + $0x68] sm:$0xff] %v292
      %309 = vst [vmem:[%s245 + $0x70] sm:$0xff] %v293
      %310 = vst [vmem:[%s245 + $0x78] sm:$0xff] %v294
      %p311 = scmp.eq.s32.totalorder %s16, 0
      // Predicated region
      $region33: #{model_forward.1} parent=31 // pred_check
        %p312 = pneg %p311
      $region34: #{model_forward.1} parent=31 // pred_check_branch
        %314 = sbr.rel (%p312) target = $region36
      $region35: #{model_forward.1} parent=31 // pred_region
        %v315 = vld [vmem:[%s0] sm:$0xff]
        %v316 = vld [vmem:[%s0 + $0x8] sm:$0xff]
        %v317 = vld [vmem:[%s0 + $0x10] sm:$0xff]
        %s318 = scalar_lea.vmem %s0, 24
        %v319 = vld [vmem:[%s318] sm:$0xff]
        %v320 = vld [vmem:[%s318 + $0x8] sm:$0xff]
        %v321 = vld [vmem:[%s318 + $0x10] sm:$0xff]
        %v322 = vsub.f32 %v315, %v319
        %v323 = vsub.f32 %v316, %v320
        %v324 = vsub.f32 %v317, %v321
        %325 = vst [vmem:[%s238] sm:$0xff] %v322
        %326 = vst [vmem:[%s238 + $0x8] sm:$0xff] %v323
        %327 = vst [vmem:[%s238 + $0x10] sm:$0xff] %v324
        %v328 = vld [vmem:[%s318] sm:$0xff]
        %v329 = vld [vmem:[%s318 + $0x8] sm:$0xff]
        %v330 = vld [vmem:[%s318 + $0x10] sm:$0xff]
        %v331 = vld [vmem:[%s0] sm:$0xff]
        %v332 = vld [vmem:[%s0 + $0x8] sm:$0xff]
        %v333 = vld [vmem:[%s0 + $0x10] sm:$0xff]
        %v334 = vsub.f32 %v328, %v331
        %v335 = vsub.f32 %v329, %v332
        %v336 = vsub.f32 %v330, %v333
        %s337 = scalar_lea.vmem %s238, 24
        %338 = vst [vmem:[%s337] sm:$0xff] %v334
        %339 = vst [vmem:[%s337 + $0x8] sm:$0xff] %v335
        %340 = vst [vmem:[%s337 + $0x10] sm:$0xff] %v336
        %v341 = vld [vmem:[%s0] sm:$0xff]
        %v342 = vld [vmem:[%s0 + $0x8] sm:$0xff]
        %v343 = vld [vmem:[%s0 + $0x10] sm:$0xff]
        %s344 = scalar_lea.vmem %s0, 48
        %v345 = vld [vmem:[%s344] sm:$0xff]
        %v346 = vld [vmem:[%s344 + $0x8] sm:$0xff]
        %v347 = vld [vmem:[%s344 + $0x10] sm:$0xff]
        %v348 = vsub.f32 %v341, %v345
        %v349 = vsub.f32 %v342, %v346
        %v350 = vsub.f32 %v343, %v347
        %s351 = scalar_lea.vmem %s238, 48
        %352 = vst [vmem:[%s351] sm:$0xff] %v348
        %353 = vst [vmem:[%s351 + $0x8] sm:$0xff] %v349
        %354 = vst [vmem:[%s351 + $0x10] sm:$0xff] %v350
        %v355 = vld [vmem:[%s344] sm:$0xff]
        %v356 = vld [vmem:[%s344 + $0x8] sm:$0xff]
        %v357 = vld [vmem:[%s344 + $0x10] sm:$0xff]
        %v358 = vld [vmem:[%s0] sm:$0xff]
        %v359 = vld [vmem:[%s0 + $0x8] sm:$0xff]
        %v360 = vld [vmem:[%s0 + $0x10] sm:$0xff]
        %v361 = vsub.f32 %v355, %v358
        %v362 = vsub.f32 %v356, %v359
        %v363 = vsub.f32 %v357, %v360
        %s364 = scalar_lea.vmem %s238, 72
        %365 = vst [vmem:[%s364] sm:$0xff] %v361
        %366 = vst [vmem:[%s364 + $0x8] sm:$0xff] %v362
        %367 = vst [vmem:[%s364 + $0x10] sm:$0xff] %v363
        %v368 = vld [vmem:[%s0] sm:$0xff]
        %v369 = vld [vmem:[%s0 + $0x8] sm:$0xff]
        %v370 = vld [vmem:[%s0 + $0x10] sm:$0xff]
        %s371 = scalar_lea.vmem %s0, 72
        %v372 = vld [vmem:[%s371] sm:$0xff]
        %v373 = vld [vmem:[%s371 + $0x8] sm:$0xff]
        %v374 = vld [vmem:[%s371 + $0x10] sm:$0xff]
        %v375 = vsub.f32 %v368, %v372
        %v376 = vsub.f32 %v369, %v373
        %v377 = vsub.f32 %v370, %v374
        %s378 = scalar_lea.vmem %s238, 96
        %379 = vst [vmem:[%s378] sm:$0xff] %v375
        %380 = vst [vmem:[%s378 + $0x8] sm:$0xff] %v376
        %381 = vst [vmem:[%s378 + $0x10] sm:$0xff] %v377
        %v382 = vld [vmem:[%s371] sm:$0xff]
        %v383 = vld [vmem:[%s371 + $0x8] sm:$0xff]
        %v384 = vld [vmem:[%s371 + $0x10] sm:$0xff]
        %v385 = vld [vmem:[%s0] sm:$0xff]
        %v386 = vld [vmem:[%s0 + $0x8] sm:$0xff]
        %v387 = vld [vmem:[%s0 + $0x10] sm:$0xff]
        %v388 = vsub.f32 %v382, %v385
        %v389 = vsub.f32 %v383, %v386
        %v390 = vsub.f32 %v384, %v387
        %s391 = scalar_lea.vmem %s238, 120
        %392 = vst [vmem:[%s391] sm:$0xff] %v388
        %393 = vst [vmem:[%s391 + $0x8] sm:$0xff] %v389
        %394 = vst [vmem:[%s391 + $0x10] sm:$0xff] %v390
        %v395 = vld [vmem:[%s0] sm:$0xff]
        %v396 = vld [vmem:[%s0 + $0x8] sm:$0xff]
        %v397 = vld [vmem:[%s0 + $0x10] sm:$0xff]
        %s398 = scalar_lea.vmem %s0, 96
        %v399 = vld [vmem:[%s398] sm:$0xff]
        %v400 = vld [vmem:[%s398 + $0x8] sm:$0xff]
        %v401 = vld [vmem:[%s398 + $0x10] sm:$0xff]
        %v402 = vsub.f32 %v395, %v399
        %v403 = vsub.f32 %v396, %v400
        %v404 = vsub.f32 %v397, %v401
        %s405 = scalar_lea.vmem %s238, 144
        %406 = vst [vmem:[%s405] sm:$0xff] %v402
        %407 = vst [vmem:[%s405 + $0x8] sm:$0xff] %v403
        %408 = vst [vmem:[%s405 + $0x10] sm:$0xff] %v404
        %v409 = vld [vmem:[%s398] sm:$0xff]
        %v410 = vld [vmem:[%s398 + $0x8] sm:$0xff]
        %v411 = vld [vmem:[%s398 + $0x10] sm:$0xff]
        %v412 = vld [vmem:[%s0] sm:$0xff]
        %v413 = vld [vmem:[%s0 + $0x8] sm:$0xff]
        %v414 = vld [vmem:[%s0 + $0x10] sm:$0xff]
        %v415 = vsub.f32 %v409, %v412
        %v416 = vsub.f32 %v410, %v413
        %v417 = vsub.f32 %v411, %v414
        %s418 = scalar_lea.vmem %s238, 168
        %419 = vst [vmem:[%s418] sm:$0xff] %v415
        %420 = vst [vmem:[%s418 + $0x8] sm:$0xff] %v416
        %421 = vst [vmem:[%s418 + $0x10] sm:$0xff] %v417
        %v422 = vld [vmem:[%s0] sm:$0xff]
        %v423 = vld [vmem:[%s0 + $0x8] sm:$0xff]
        %v424 = vld [vmem:[%s0 + $0x10] sm:$0xff]
        %s425 = scalar_lea.vmem %s0, 120
        %v426 = vld [vmem:[%s425] sm:$0xff]
        %v427 = vld [vmem:[%s425 + $0x8] sm:$0xff]
        %v428 = vld [vmem:[%s425 + $0x10] sm:$0xff]
        %v429 = vsub.f32 %v422, %v426
        %v430 = vsub.f32 %v423, %v427
        %v431 = vsub.f32 %v424, %v428
        %s432 = scalar_lea.vmem %s238, 192
        %433 = vst [vmem:[%s432] sm:$0xff] %v429
        %434 = vst [vmem:[%s432 + $0x8] sm:$0xff] %v430
        %435 = vst [vmem:[%s432 + $0x10] sm:$0xff] %v431
        %v436 = vld [vmem:[%s425] sm:$0xff]
        %v437 = vld [vmem:[%s425 + $0x8] sm:$0xff]
        %v438 = vld [vmem:[%s425 + $0x10] sm:$0xff]
        %v439 = vld [vmem:[%s0] sm:$0xff]
        %v440 = vld [vmem:[%s0 + $0x8] sm:$0xff]
        %v441 = vld [vmem:[%s0 + $0x10] sm:$0xff]
        %v442 = vsub.f32 %v436, %v439
        %v443 = vsub.f32 %v437, %v440
        %v444 = vsub.f32 %v438, %v441
        %s445 = scalar_lea.vmem %s238, 216
        %446 = vst [vmem:[%s445] sm:$0xff] %v442
        %447 = vst [vmem:[%s445 + $0x8] sm:$0xff] %v443
        %448 = vst [vmem:[%s445 + $0x10] sm:$0xff] %v444
        %v449 = vld [vmem:[%s0] sm:$0xff]
        %v450 = vld [vmem:[%s0 + $0x8] sm:$0xff]
        %v451 = vld [vmem:[%s0 + $0x10] sm:$0xff]
        %s452 = scalar_lea.vmem %s0, 144
        %v453 = vld [vmem:[%s452] sm:$0xff]
        %v454 = vld [vmem:[%s452 + $0x8] sm:$0xff]
        %v455 = vld [vmem:[%s452 + $0x10] sm:$0xff]
        %v456 = vsub.f32 %v449, %v453
        %v457 = vsub.f32 %v450, %v454
        %v458 = vsub.f32 %v451, %v455
        %s459 = scalar_lea.vmem %s238, 240
        %460 = vst [vmem:[%s459] sm:$0xff] %v456
        %461 = vst [vmem:[%s459 + $0x8] sm:$0xff] %v457
        %462 = vst [vmem:[%s459 + $0x10] sm:$0xff] %v458
        %v463 = vld [vmem:[%s452] sm:$0xff]
        %v464 = vld [vmem:[%s452 + $0x8] sm:$0xff]
        %v465 = vld [vmem:[%s452 + $0x10] sm:$0xff]
        %v466 = vld [vmem:[%s0] sm:$0xff]
        %v467 = vld [vmem:[%s0 + $0x8] sm:$0xff]
        %v468 = vld [vmem:[%s0 + $0x10] sm:$0xff]
        %v469 = vsub.f32 %v463, %v466
        %v470 = vsub.f32 %v464, %v467
        %v471 = vsub.f32 %v465, %v468
        %s472 = scalar_lea.vmem %s238, 264
        %473 = vst [vmem:[%s472] sm:$0xff] %v469
        %474 = vst [vmem:[%s472 + $0x8] sm:$0xff] %v470
        %475 = vst [vmem:[%s472 + $0x10] sm:$0xff] %v471
        %v476 = vld [vmem:[%s0] sm:$0xff]
        %v477 = vld [vmem:[%s0 + $0x8] sm:$0xff]
        %v478 = vld [vmem:[%s0 + $0x10] sm:$0xff]
        %s479 = scalar_lea.vmem %s0, 168
        %v480 = vld [vmem:[%s479] sm:$0xff]
        %v481 = vld [vmem:[%s479 + $0x8] sm:$0xff]
        %v482 = vld [vmem:[%s479 + $0x10] sm:$0xff]
        %v483 = vsub.f32 %v476, %v480
        %v484 = vsub.f32 %v477, %v481
        %v485 = vsub.f32 %v478, %v482
        %s486 = scalar_lea.vmem %s238, 288
        %487 = vst [vmem:[%s486] sm:$0xff] %v483
        %488 = vst [vmem:[%s486 + $0x8] sm:$0xff] %v484
        %489 = vst [vmem:[%s486 + $0x10] sm:$0xff] %v485
        %v490 = vld [vmem:[%s479] sm:$0xff]
        %v491 = vld [vmem:[%s479 + $0x8] sm:$0xff]
        %v492 = vld [vmem:[%s479 + $0x10] sm:$0xff]
        %v493 = vld [vmem:[%s0] sm:$0xff]
        %v494 = vld [vmem:[%s0 + $0x8] sm:$0xff]
        %v495 = vld [vmem:[%s0 + $0x10] sm:$0xff]
        %v496 = vsub.f32 %v490, %v493
        %v497 = vsub.f32 %v491, %v494
        %v498 = vsub.f32 %v492, %v495
        %s499 = scalar_lea.vmem %s238, 312
        %500 = vst [vmem:[%s499] sm:$0xff] %v496
        %501 = vst [vmem:[%s499 + $0x8] sm:$0xff] %v497
        %502 = vst [vmem:[%s499 + $0x10] sm:$0xff] %v498
        %v503 = vld [vmem:[%s0] sm:$0xff]
        %v504 = vld [vmem:[%s0 + $0x8] sm:$0xff]
        %v505 = vld [vmem:[%s0 + $0x10] sm:$0xff]
        %s506 = scalar_lea.vmem %s0, 192
        %v507 = vld [vmem:[%s506] sm:$0xff]
        %v508 = vld [vmem:[%s506 + $0x8] sm:$0xff]
        %v509 = vld [vmem:[%s506 + $0x10] sm:$0xff]
        %v510 = vsub.f32 %v503, %v507
        %v511 = vsub.f32 %v504, %v508
        %v512 = vsub.f32 %v505, %v509
        %s513 = scalar_lea.vmem %s238, 336
        %514 = vst [vmem:[%s513] sm:$0xff] %v510
        %515 = vst [vmem:[%s513 + $0x8] sm:$0xff] %v511
        %516 = vst [vmem:[%s513 + $0x10] sm:$0xff] %v512
        %v517 = vld [vmem:[%s506] sm:$0xff]
        %v518 = vld [vmem:[%s506 + $0x8] sm:$0xff]
        %v519 = vld [vmem:[%s506 + $0x10] sm:$0xff]
        %v520 = vld [vmem:[%s0] sm:$0xff]
        %v521 = vld [vmem:[%s0 + $0x8] sm:$0xff]
        %v522 = vld [vmem:[%s0 + $0x10] sm:$0xff]
        %v523 = vsub.f32 %v517, %v520
        %v524 = vsub.f32 %v518, %v521
        %v525 = vsub.f32 %v519, %v522
        %s526 = scalar_lea.vmem %s238, 360
        %527 = vst [vmem:[%s526] sm:$0xff] %v523
        %528 = vst [vmem:[%s526 + $0x8] sm:$0xff] %v524
        %529 = vst [vmem:[%s526 + $0x10] sm:$0xff] %v525
      $region36: #{model_forward.1} parent=31 // pred_fallthru
        _
      %p530 = scmp.eq.s32.totalorder %s16, 1
      // Predicated region
      $region37: #{model_forward.1} parent=31 // pred_check
        %p531 = pneg %p530
      $region38: #{model_forward.1} parent=31 // pred_check_branch
        %533 = sbr.rel (%p531) target = $region40
      $region39: #{model_forward.1} parent=31 // pred_region
        %v534 = vld [vmem:[%s0] sm:$0xff]
        %v535 = vld [vmem:[%s0 + $0x8] sm:$0xff]
        %v536 = vld [vmem:[%s0 + $0x10] sm:$0xff]
        %s537 = scalar_lea.vmem %s0, 216
        %v538 = vld [vmem:[%s537] sm:$0xff]
        %v539 = vld [vmem:[%s537 + $0x8] sm:$0xff]
        %v540 = vld [vmem:[%s537 + $0x10] sm:$0xff]
        %v541 = vsub.f32 %v534, %v538
        %v542 = vsub.f32 %v535, %v539
        %v543 = vsub.f32 %v536, %v540
        %544 = vst [vmem:[%s238] sm:$0xff] %v541
        %545 = vst [vmem:[%s238 + $0x8] sm:$0xff] %v542
        %546 = vst [vmem:[%s238 + $0x10] sm:$0xff] %v543
        %v547 = vld [vmem:[%s537] sm:$0xff]
        %v548 = vld [vmem:[%s537 + $0x8] sm:$0xff]
        %v549 = vld [vmem:[%s537 + $0x10] sm:$0xff]
        %v550 = vld [vmem:[%s0] sm:$0xff]
        %v551 = vld [vmem:[%s0 + $0x8] sm:$0xff]
        %v552 = vld [vmem:[%s0 + $0x10] sm:$0xff]
        %v553 = vsub.f32 %v547, %v550
        %v554 = vsub.f32 %v548, %v551
        %v555 = vsub.f32 %v549, %v552
        %s556 = scalar_lea.vmem %s238, 24
        %557 = vst [vmem:[%s556] sm:$0xff] %v553
        %558 = vst [vmem:[%s556 + $0x8] sm:$0xff] %v554
        %559 = vst [vmem:[%s556 + $0x10] sm:$0xff] %v555
        %v560 = vld [vmem:[%s0] sm:$0xff]
        %v561 = vld [vmem:[%s0 + $0x8] sm:$0xff]
        %v562 = vld [vmem:[%s0 + $0x10] sm:$0xff]
        %s563 = scalar_lea.vmem %s0, 240
        %v564 = vld [vmem:[%s563] sm:$0xff]
        %v565 = vld [vmem:[%s563 + $0x8] sm:$0xff]
        %v566 = vld [vmem:[%s563 + $0x10] sm:$0xff]
        %v567 = vsub.f32 %v560, %v564
        %v568 = vsub.f32 %v561, %v565
        %v569 = vsub.f32 %v562, %v566
        %s570 = scalar_lea.vmem %s238, 48
        %571 = vst [vmem:[%s570] sm:$0xff] %v567
        %572 = vst [vmem:[%s570 + $0x8] sm:$0xff] %v568
        %573 = vst [vmem:[%s570 + $0x10] sm:$0xff] %v569
        %v574 = vld [vmem:[%s563] sm:$0xff]
        %v575 = vld [vmem:[%s563 + $0x8] sm:$0xff]
        %v576 = vld [vmem:[%s563 + $0x10] sm:$0xff]
        %v577 = vld [vmem:[%s0] sm:$0xff]
        %v578 = vld [vmem:[%s0 + $0x8] sm:$0xff]
        %v579 = vld [vmem:[%s0 + $0x10] sm:$0xff]
        %v580 = vsub.f32 %v574, %v577
        %v581 = vsub.f32 %v575, %v578
        %v582 = vsub.f32 %v576, %v579
        %s583 = scalar_lea.vmem %s238, 72
        %584 = vst [vmem:[%s583] sm:$0xff] %v580
        %585 = vst [vmem:[%s583 + $0x8] sm:$0xff] %v581
        %586 = vst [vmem:[%s583 + $0x10] sm:$0xff] %v582
        %v587 = vld [vmem:[%s0] sm:$0xff]
        %v588 = vld [vmem:[%s0 + $0x8] sm:$0xff]
        %v589 = vld [vmem:[%s0 + $0x10] sm:$0xff]
        %s590 = scalar_lea.vmem %s0, 264
        %v591 = vld [vmem:[%s590] sm:$0xff]
        %v592 = vld [vmem:[%s590 + $0x8] sm:$0xff]
        %v593 = vld [vmem:[%s590 + $0x10] sm:$0xff]
        %v594 = vsub.f32 %v587, %v591
        %v595 = vsub.f32 %v588, %v592
        %v596 = vsub.f32 %v589, %v593
        %s597 = scalar_lea.vmem %s238, 96
        %598 = vst [vmem:[%s597] sm:$0xff] %v594
        %599 = vst [vmem:[%s597 + $0x8] sm:$0xff] %v595
        %600 = vst [vmem:[%s597 + $0x10] sm:$0xff] %v596
        %v601 = vld [vmem:[%s590] sm:$0xff]
        %v602 = vld [vmem:[%s590 + $0x8] sm:$0xff]
        %v603 = vld [vmem:[%s590 + $0x10] sm:$0xff]
        %v604 = vld [vmem:[%s0] sm:$0xff]
        %v605 = vld [vmem:[%s0 + $0x8] sm:$0xff]
        %v606 = vld [vmem:[%s0 + $0x10] sm:$0xff]
        %v607 = vsub.f32 %v601, %v604
        %v608 = vsub.f32 %v602, %v605
        %v609 = vsub.f32 %v603, %v606
        %s610 = scalar_lea.vmem %s238, 120
        %611 = vst [vmem:[%s610] sm:$0xff] %v607
        %612 = vst [vmem:[%s610 + $0x8] sm:$0xff] %v608
        %613 = vst [vmem:[%s610 + $0x10] sm:$0xff] %v609
        %v614 = vld [vmem:[%s0] sm:$0xff]
        %v615 = vld [vmem:[%s0 + $0x8] sm:$0xff]
        %v616 = vld [vmem:[%s0 + $0x10] sm:$0xff]
        %s617 = scalar_lea.vmem %s0, 288
        %v618 = vld [vmem:[%s617] sm:$0xff]
        %v619 = vld [vmem:[%s617 + $0x8] sm:$0xff]
        %v620 = vld [vmem:[%s617 + $0x10] sm:$0xff]
        %v621 = vsub.f32 %v614, %v618
        %v622 = vsub.f32 %v615, %v619
        %v623 = vsub.f32 %v616, %v620
        %s624 = scalar_lea.vmem %s238, 144
        %625 = vst [vmem:[%s624] sm:$0xff] %v621
        %626 = vst [vmem:[%s624 + $0x8] sm:$0xff] %v622
        %627 = vst [vmem:[%s624 + $0x10] sm:$0xff] %v623
        %v628 = vld [vmem:[%s617] sm:$0xff]
        %v629 = vld [vmem:[%s617 + $0x8] sm:$0xff]
        %v630 = vld [vmem:[%s617 + $0x10] sm:$0xff]
        %v631 = vld [vmem:[%s0] sm:$0xff]
        %v632 = vld [vmem:[%s0 + $0x8] sm:$0xff]
        %v633 = vld [vmem:[%s0 + $0x10] sm:$0xff]
        %v634 = vsub.f32 %v628, %v631
        %v635 = vsub.f32 %v629, %v632
        %v636 = vsub.f32 %v630, %v633
        %s637 = scalar_lea.vmem %s238, 168
        %638 = vst [vmem:[%s637] sm:$0xff] %v634
        %639 = vst [vmem:[%s637 + $0x8] sm:$0xff] %v635
        %640 = vst [vmem:[%s637 + $0x10] sm:$0xff] %v636
        %v641 = vld [vmem:[%s0] sm:$0xff]
        %v642 = vld [vmem:[%s0 + $0x8] sm:$0xff]
        %v643 = vld [vmem:[%s0 + $0x10] sm:$0xff]
        %s644 = scalar_lea.vmem %s0, 312
        %v645 = vld [vmem:[%s644] sm:$0xff]
        %v646 = vld [vmem:[%s644 + $0x8] sm:$0xff]
        %v647 = vld [vmem:[%s644 + $0x10] sm:$0xff]
        %v648 = vsub.f32 %v641, %v645
        %v649 = vsub.f32 %v642, %v646
        %v650 = vsub.f32 %v643, %v647
        %s651 = scalar_lea.vmem %s238, 192
        %652 = vst [vmem:[%s651] sm:$0xff] %v648
        %653 = vst [vmem:[%s651 + $0x8] sm:$0xff] %v649
        %654 = vst [vmem:[%s651 + $0x10] sm:$0xff] %v650
        %v655 = vld [vmem:[%s644] sm:$0xff]
        %v656 = vld [vmem:[%s644 + $0x8] sm:$0xff]
        %v657 = vld [vmem:[%s644 + $0x10] sm:$0xff]
        %v658 = vld [vmem:[%s0] sm:$0xff]
        %v659 = vld [vmem:[%s0 + $0x8] sm:$0xff]
        %v660 = vld [vmem:[%s0 + $0x10] sm:$0xff]
        %v661 = vsub.f32 %v655, %v658
        %v662 = vsub.f32 %v656, %v659
        %v663 = vsub.f32 %v657, %v660
        %s664 = scalar_lea.vmem %s238, 216
        %665 = vst [vmem:[%s664] sm:$0xff] %v661
        %666 = vst [vmem:[%s664 + $0x8] sm:$0xff] %v662
        %667 = vst [vmem:[%s664 + $0x10] sm:$0xff] %v663
        %v668 = vld [vmem:[%s0] sm:$0xff]
        %v669 = vld [vmem:[%s0 + $0x8] sm:$0xff]
        %v670 = vld [vmem:[%s0 + $0x10] sm:$0xff]
        %s671 = scalar_lea.vmem %s0, 336
        %v672 = vld [vmem:[%s671] sm:$0xff]
        %v673 = vld [vmem:[%s671 + $0x8] sm:$0xff]
        %v674 = vld [vmem:[%s671 + $0x10] sm:$0xff]
        %v675 = vsub.f32 %v668, %v672
        %v676 = vsub.f32 %v669, %v673
        %v677 = vsub.f32 %v670, %v674
        %s678 = scalar_lea.vmem %s238, 240
        %679 = vst [vmem:[%s678] sm:$0xff] %v675
        %680 = vst [vmem:[%s678 + $0x8] sm:$0xff] %v676
        %681 = vst [vmem:[%s678 + $0x10] sm:$0xff] %v677
        %v682 = vld [vmem:[%s671] sm:$0xff]
        %v683 = vld [vmem:[%s671 + $0x8] sm:$0xff]
        %v684 = vld [vmem:[%s671 + $0x10] sm:$0xff]
        %v685 = vld [vmem:[%s0] sm:$0xff]
        %v686 = vld [vmem:[%s0 + $0x8] sm:$0xff]
        %v687 = vld [vmem:[%s0 + $0x10] sm:$0xff]
        %v688 = vsub.f32 %v682, %v685
        %v689 = vsub.f32 %v683, %v686
        %v690 = vsub.f32 %v684, %v687
        %s691 = scalar_lea.vmem %s238, 264
        %692 = vst [vmem:[%s691] sm:$0xff] %v688
        %693 = vst [vmem:[%s691 + $0x8] sm:$0xff] %v689
        %694 = vst [vmem:[%s691 + $0x10] sm:$0xff] %v690
        %v695 = vld [vmem:[%s0] sm:$0xff]
        %v696 = vld [vmem:[%s0 + $0x8] sm:$0xff]
        %v697 = vld [vmem:[%s0 + $0x10] sm:$0xff]
        %s698 = scalar_lea.vmem %s0, 360
        %v699 = vld [vmem:[%s698] sm:$0xff]
        %v700 = vld [vmem:[%s698 + $0x8] sm:$0xff]
        %v701 = vld [vmem:[%s698 + $0x10] sm:$0xff]
        %v702 = vsub.f32 %v695, %v699
        %v703 = vsub.f32 %v696, %v700
        %v704 = vsub.f32 %v697, %v701
        %s705 = scalar_lea.vmem %s238, 288
        %706 = vst [vmem:[%s705] sm:$0xff] %v702
        %707 = vst [vmem:[%s705 + $0x8] sm:$0xff] %v703
        %708 = vst [vmem:[%s705 + $0x10] sm:$0xff] %v704
        %v709 = vld [vmem:[%s698] sm:$0xff]
        %v710 = vld [vmem:[%s698 + $0x8] sm:$0xff]
        %v711 = vld [vmem:[%s698 + $0x10] sm:$0xff]
        %v712 = vld [vmem:[%s0] sm:$0xff]
        %v713 = vld [vmem:[%s0 + $0x8] sm:$0xff]
        %v714 = vld [vmem:[%s0 + $0x10] sm:$0xff]
        %v715 = vsub.f32 %v709, %v712
        %v716 = vsub.f32 %v710, %v713
        %v717 = vsub.f32 %v711, %v714
        %s718 = scalar_lea.vmem %s238, 312
        %719 = vst [vmem:[%s718] sm:$0xff] %v715
        %720 = vst [vmem:[%s718 + $0x8] sm:$0xff] %v716
        %721 = vst [vmem:[%s718 + $0x10] sm:$0xff] %v717
        %v722 = vld [vmem:[%s590] sm:$0xff]
        %v723 = vld [vmem:[%s590 + $0x8] sm:$0xff]
        %v724 = vld [vmem:[%s590 + $0x10] sm:$0xff]
        %v725 = vld [vmem:[%s671] sm:$0xff]
        %v726 = vld [vmem:[%s671 + $0x8] sm:$0xff]
        %v727 = vld [vmem:[%s671 + $0x10] sm:$0xff]
        %v728 = vsub.f32 %v722, %v725
        %v729 = vsub.f32 %v723, %v726
        %v730 = vsub.f32 %v724, %v727
        %s731 = scalar_lea.vmem %s238, 336
        %732 = vst [vmem:[%s731] sm:$0xff] %v728
        %733 = vst [vmem:[%s731 + $0x8] sm:$0xff] %v729
        %734 = vst [vmem:[%s731 + $0x10] sm:$0xff] %v730
        %v735 = vld [vmem:[%s698] sm:$0xff]
        %v736 = vld [vmem:[%s698 + $0x8] sm:$0xff]
        %v737 = vld [vmem:[%s698 + $0x10] sm:$0xff]
        %v738 = vld [vmem:[%s671] sm:$0xff]
        %v739 = vld [vmem:[%s671 + $0x8] sm:$0xff]
        %v740 = vld [vmem:[%s671 + $0x10] sm:$0xff]
        %v741 = vsub.f32 %v735, %v738
        %v742 = vsub.f32 %v736, %v739
        %v743 = vsub.f32 %v737, %v740
        %s744 = scalar_lea.vmem %s238, 360
        %745 = vst [vmem:[%s744] sm:$0xff] %v741
        %746 = vst [vmem:[%s744 + $0x8] sm:$0xff] %v742
        %747 = vst [vmem:[%s744 + $0x10] sm:$0xff] %v743
      $region40: #{model_forward.1} parent=31 // pred_fallthru
        _
      %s748 = smul.u32 16, %s16
      %p749 = scmp.lt.s32.totalorder %s748, 31
      %s750 = scalar_select %p749, %s748, 31
      %s751 = smul.addr %s750, 3
      %s752 = smul.addr %s751, 8
      %s753 = scalar_lea.vmem %s3, %s752
      %s754 = smul.u32 2, %s16
      %p755 = scmp.lt.s32.totalorder %s754, 3
      %s756 = scalar_select %p755, %s754, 3
      %s757 = smul.addr %s756, 8
      %s758 = smul.addr %s757, 8
      %s759 = scalar_lea.vmem %s4, %s758
      // Predicated region
      $region41: #{model_forward.1} parent=31 // pred_check
        %p760 = pneg %p107
      $region42: #{model_forward.1} parent=31 // pred_check_branch
        %762 = sbr.rel (%p760) target = $region44
      $region43: #{model_forward.1} parent=31 // pred_region
        %s763 = smul.u32 16, %s16
      $region44: #{model_forward.1} parent=31 // pred_fallthru
        _
      // Predicated region
      $region45: #{model_forward.1} parent=31 // pred_check
        %p764 = pneg %p133
      $region46: #{model_forward.1} parent=31 // pred_check_branch
        %766 = sbr.rel (%p764) target = $region48
      $region47: #{model_forward.1} parent=31 // pred_region
        %s767 = smul.u32 2, %s16
      $region48: #{model_forward.1} parent=31 // pred_fallthru
        _
    $region32: #{model_forward.1} parent=5 // pred_fallthru
      _
    %p768 = scmp.le.s32.totalorder 2, %s11
    // Predicated region
    $region49: #{model_forward.1} parent=5 // pred_check
      %p769 = pneg %p768
    $region50: #{model_forward.1} parent=5 // pred_check_branch
      %771 = sbr.rel (%p769) target = $region52
    $region51: #{model_forward.1} parent=5 // pred_region
      %s772 = ssub.s32 %s11, 2
      // Predicated region
      $region53: #{model_forward.1} parent=51 // pred_check
        %p773 = pneg %p113
      $region54: #{model_forward.1} parent=51 // pred_check_branch
        %775 = sbr.rel (%p773) target = $region56
      $region55: #{model_forward.1} parent=51 // pred_region
        %s776 = smul.u32 16, %s17
        %p777 = scmp.lt.s32.totalorder %s776, 31
        %s778 = scalar_select %p777, %s776, 31
        %s779 = smul.addr %s778, 3
        %s780 = smul.addr %s779, 8
        %s781 = scalar_lea.vmem %s3, %s780
      $region56: #{model_forward.1} parent=51 // pred_fallthru
        _
      // Predicated region
      $region57: #{model_forward.1} parent=51 // pred_check
        %p782 = pneg %p139
      $region58: #{model_forward.1} parent=51 // pred_check_branch
        %784 = sbr.rel (%p782) target = $region60
      $region59: #{model_forward.1} parent=51 // pred_region
        %s785 = smul.u32 2, %s17
        %p786 = scmp.lt.s32.totalorder %s785, 3
        %s787 = scalar_select %p786, %s785, 3
        %s788 = smul.addr %s787, 8
        %s789 = smul.addr %s788, 8
        %s790 = scalar_lea.vmem %s4, %s789
      $region60: #{model_forward.1} parent=51 // pred_fallthru
        _
    $region52: #{model_forward.1} parent=5 // pred_fallthru
      _
  $region6: #{model_forward.1} parent=0 // loop_footer
    %s15 = sadd.s32 1, %s11
  $region7: #{model_forward.1} parent=0 // loop_footer_branch
    %10 = sbr.rel target = $region3
  $region8: #{model_forward.1} parent=0 // loop_exit
    _

</llo_original>
